<compile_context>
chip_gen: v7x
topology: tpu7x:2x2x1
jax: 0.10.0
libtpu: 0.0.40
codegen_flags: <defaults>
</compile_context>

<pallas_src>
import jax
import jax.numpy as jnp
from jax.experimental import pallas as pl
from jax.experimental.pallas import tpu as pltpu


# ----------------------------------------------------------------------------------
# Kernel
# ----------------------------------------------------------------------------------
def _make_detector_kernel(Bp, Cp, branch_metas, fc_rows, bias_row):
    """branch_metas: tuple of dicts with static ints {H, L, T, off:{xg, whh0, wup, bup}}."""
    n_branches = len(branch_metas)

    def kernel(*refs):
        slab_refs = refs[:n_branches]
        fc_ref = refs[n_branches]
        out_ref = refs[n_branches + 1]

        h_tops = []
        for meta, sref in zip(branch_metas, slab_refs):
            H, L, T, off = meta["H"], meta["L"], meta["T"], meta["off"]
            G = 4 * H

            # Single-sigmoid gate activation: the wrapper pre-scaled the g-gate
            # pre-activations by 2, so  act = sigmoid(gates) * scale + shift  yields
            # tanh on the g lanes (tanh(x) = 2*sigmoid(2x) - 1) and sigmoid elsewhere.
            lane = jax.lax.broadcasted_iota(jnp.int32, (Bp, G), 1)
            is_g = (lane >= 2 * H) & (lane < 3 * H)
            a_scale = jnp.where(is_g, 2.0, 1.0)
            a_shift = jnp.where(is_g, -1.0, 0.0)

            # Weight / bias loads hoisted out of the recurrence (one VMEM read each).
            w_up = [sref[pl.ds(off["wup"][l], 2 * H), :] for l in range(L - 1)]
            b_up = [sref[pl.ds(off["bup"][l], Bp), :] for l in range(L - 1)]
            wih_up = [w[0:H, :] for w in w_up]          # input-half, for the t==0 peel
            whh0 = sref[pl.ds(off["whh0"], H), :] if T > 1 else None

            def activate(gates):
                act = jax.nn.sigmoid(gates) * a_scale + a_shift
                return (act[:, 0:H], act[:, H:2 * H],
                        act[:, 2 * H:3 * H], act[:, 3 * H:4 * H])

            h = [None] * L
            c = [None] * L
            for t in range(T):                 # tiny static trip counts -> full unroll
                xg_t = sref[pl.ds(off["xg"] + t * Bp, Bp), :]          # (Bp, 4H)
                for l in range(L):
                    if t == 0:
                        # Peeled first step: h/c are zero -> no recurrent matmul and no
                        # f*c term. Layer 0 is matmul-free (its input projection + bias
                        # are precomputed into xg in the wrapper).
                        if l == 0:
                            gates = xg_t
                        else:
                            gates = jnp.dot(h[l - 1], wih_up[l - 1],
                                            preferred_element_type=jnp.float32)
                            gates = gates + b_up[l - 1]
                        i_a, _, g_a, o_a = activate(gates)
                        c[l] = i_a * g_a
                    else:
                        if l == 0:
                            gates = xg_t + jnp.dot(h[0], whh0,
                                                   preferred_element_type=jnp.float32)
                        else:
                            # One fused matmul per upper-layer cell:
                            #   [h_{l-1} | h_l] @ [W_ih^T ; W_hh^T]
                            hcat = jnp.concatenate([h[l - 1], h[l]], axis=1)
                            gates = jnp.dot(hcat, w_up[l - 1],
                                            preferred_element_type=jnp.float32)
                            gates = gates + b_up[l - 1]
                        i_a, f_a, g_a, o_a = activate(gates)
                        c[l] = f_a * c[l] + i_a * g_a
                    h[l] = o_a * jnp.tanh(c[l])
            h_tops.append(h[L - 1])

        # Merged output head: [h_top_0 | h_top_1 | ...] @ vstack(merged fc) + bias.
        h_all = jnp.concatenate(h_tops, axis=1)                       # (Bp, H_total)
        fc_w = fc_ref[pl.ds(0, fc_rows), :]                           # (H_total, Cp)
        bias = fc_ref[pl.ds(bias_row, 1), :]                          # (1, Cp)
        out_ref[...] = jnp.dot(h_all, fc_w,
                               preferred_element_type=jnp.float32) + bias

    return kernel


# ----------------------------------------------------------------------------------
# Wrapper-side parameter preparation
# ----------------------------------------------------------------------------------
def _std_branch(bp, xg, final_w_block, Bp):
    """Standard-form branch: pre-transposed, g-prescaled, bias-folded pieces."""
    H = bp["w_hh"][0].shape[1]
    L = len(bp["w_hh"])

    def gscale(a):          # x2 on the g-gate columns (tanh == 2*sigmoid(2x)-1 rewrite)
        return a.at[..., 2 * H:3 * H].multiply(2.0)

    b0 = (bp["b_ih"][0] + bp["b_hh"][0]).reshape(1, 1, 4 * H)
    xg = gscale(xg.astype(jnp.float32) + b0)                   # (T, Bp, 4H), bias folded
    whh0 = gscale(bp["w_hh"][0].T)                             # (H, 4H)
    w_up, b_up = [], []
    for l in range(1, L):
        w_up.append(gscale(jnp.concatenate([bp["w_ih"][l].T, bp["w_hh"][l].T], axis=0)))
        bl = gscale((bp["b_ih"][l] + bp["b_hh"][l]).reshape(1, 4 * H))
        b_up.append(jnp.broadcast_to(bl, (Bp, 4 * H)))         # pre-broadcast, no per-cell bcast
    fc = bp["fc_w"].T @ final_w_block.T                        # (H, C) branch fc ∘ final fc
    fc_b = bp["fc_b"] @ final_w_block.T                        # (C,)
    return dict(H=H, L=L, T=xg.shape[0], xg=xg, whh0=whh0,
                w_up=w_up, b_up=b_up, fc=fc, fc_bias=fc_b)


def _fuse_branches(a, b):
    """Gate-interleaved block-diagonal fusion of two branches with equal (L, T).
    The fused branch behaves exactly like a single LSTM with hidden size Ha+Hb."""
    assert a["L"] == b["L"] and a["T"] == b["T"]
    Ha, Hb = a["H"], b["H"]
    L = a["L"]

    def cat_gates(xa, xb):
        # columns [i_a,i_b, f_a,f_b, g_a,g_b, o_a,o_b]  ->  standard [i,f,g,o] of width Hf
        parts = []
        for q in range(4):
            parts.append(xa[..., q * Ha:(q + 1) * Ha])
            parts.append(xb[..., q * Hb:(q + 1) * Hb])
        return jnp.concatenate(parts, axis=-1)

    xg = cat_gates(a["xg"], b["xg"])                                   # (T, Bp, 4Hf)

    # layer-0 recurrent weight: rows index h_f = [h_a | h_b]
    whh0 = cat_gates(
        jnp.concatenate([a["whh0"], jnp.zeros((Hb, 4 * Ha), jnp.float32)], axis=0),
        jnp.concatenate([jnp.zeros((Ha, 4 * Hb), jnp.float32), b["whh0"]], axis=0))

    w_up, b_up = [], []
    for l in range(L - 1):
        wa, wb = a["w_up"][l], b["w_up"][l]                            # (2Ha,4Ha), (2Hb,4Hb)
        wa_ih, wa_hh = wa[:Ha], wa[Ha:]
        wb_ih, wb_hh = wb[:Hb], wb[Hb:]
        za = jnp.zeros((Ha, 4 * Hb), jnp.float32)
        zb = jnp.zeros((Hb, 4 * Ha), jnp.float32)
        # rows index [h_a[l-1], h_b[l-1], h_a[l], h_b[l]]
        left = jnp.concatenate([wa_ih, zb, wa_hh, zb], axis=0)         # (2Hf, 4Ha)
        right = jnp.concatenate([za, wb_ih, za, wb_hh], axis=0)        # (2Hf, 4Hb)
        w_up.append(cat_gates(left, right))                            # (2Hf, 4Hf)
        b_up.append(cat_gates(a["b_up"][l], b["b_up"][l]))             # (Bp, 4Hf)

    fc = jnp.concatenate([a["fc"], b["fc"]], axis=0)                   # (Hf, C)
    return dict(H=Ha + Hb, L=L, T=a["T"], xg=xg, whh0=whh0,
                w_up=w_up, b_up=b_up, fc=fc, fc_bias=a["fc_bias"] + b["fc_bias"])


def _pack_branch(std, Bp):
    """Pack one branch's operands into a single (rows, 4H) slab with 8-aligned offsets."""
    H, L, T = std["H"], std["L"], std["T"]
    G = 4 * H
    pieces, cur = [], 0

    def add(arr):
        nonlocal cur
        o = arr.shape[0]
        rpad = -(-o // 8) * 8
        if rpad != o:
            arr = jnp.pad(arr, ((0, rpad - o), (0, 0)))
        pieces.append(arr)
        start = cur
        cur += rpad
        return start

    off = {}
    off["xg"] = add(std["xg"].reshape(T * Bp, G))
    off["whh0"] = add(std["whh0"]) if T > 1 else None      # T==1: layer-0 Whh never used
    off["wup"] = [add(w) for w in std["w_up"]]
    off["bup"] = [add(b) for b in std["b_up"]]
    slab = jnp.concatenate(pieces, axis=0)
    return slab, dict(H=H, L=L, T=T, off=off)


# ----------------------------------------------------------------------------------
# Forward wrapper
# ----------------------------------------------------------------------------------
def social_bot_detector_forward(tweet_tokens, metadata_x, desc_tokens, params):
    """tweet_tokens: int32 (B, T_tw), metadata_x: f32 (B, D), desc_tokens: int32 (B, T_ds).
    Returns (B, num_classes) float32."""
    B = tweet_tokens.shape[0]
    C = params["final_b"].shape[0]
    Bp = max(8, ((B + 7) // 8) * 8)     # pad batch to the f32 sublane count
    Cp = 128                            # lane-dense output, sliced back to C
    Tt = tweet_tokens.shape[1]
    Td = desc_tokens.shape[1]

    def pad_batch(x):
        return jnp.pad(x, ((0, Bp - B),) + ((0, 0),) * (x.ndim - 1))

    tw_tok = pad_batch(tweet_tokens)
    ds_tok = pad_batch(desc_tokens)
    md_x = pad_batch(metadata_x.astype(jnp.float32))

    tw_p, md_p, ds_p = params["tweet"], params["meta"], params["desc"]

    # Hoisted layer-0 projections, time-major (T, Bp, 4H): token branches gather from a
    # precomputed (vocab, 4H) gate table, so no (T,B,E) embedding tensor is materialized.
    # TODO(synk): dropout (TweetLSTM F.dropout + nn.LSTM inter-layer dropout) is an
    # inference-mode no-op and is intentionally not modeled.
    tw_table = tw_p["embedding"] @ tw_p["w_ih"][0].T
    tw_xg = jnp.take(tw_table, tw_tok.T.reshape(-1), axis=0).reshape(Tt, Bp, -1)
    ds_table = ds_p["embedding"] @ ds_p["w_ih"][0].T
    ds_xg = jnp.take(ds_table, ds_tok.T.reshape(-1), axis=0).reshape(Td, Bp, -1)
    md_xg = (md_x @ md_p["w_ih"][0].T).reshape(1, Bp, -1)

    # Split the final fc's input columns into the three branch blocks.
    Wf = params["final_w"]                                            # (C, 3C)
    Wf_t, Wf_m, Wf_d = Wf[:, 0:C], Wf[:, C:2 * C], Wf[:, 2 * C:3 * C]

    tw_std = _std_branch(tw_p, tw_xg, Wf_t, Bp)
    ds_std = _std_branch(ds_p, ds_xg, Wf_d, Bp)
    md_std = _std_branch(md_p, md_xg, Wf_m, Bp)

    # Block-diagonally fuse the tweet & desc recurrences when their shapes match.
    if (tw_std["L"], tw_std["T"]) == (ds_std["L"], ds_std["T"]):
        branches_std = [_fuse_branches(tw_std, ds_std), md_std]
    else:
        branches_std = [tw_std, ds_std, md_std]

    slabs, metas = [], []
    for std in branches_std:
        slab, meta = _pack_branch(std, Bp)
        slabs.append(slab)
        metas.append(meta)

    # Merged output head: vstack of per-branch merged-fc blocks + combined bias.
    fc_cat = jnp.concatenate([s["fc"] for s in branches_std], axis=0)          # (H_tot, C)
    H_total = fc_cat.shape[0]
    fc_cat = jnp.pad(fc_cat, ((0, 0), (0, Cp - C)))
    Hpad = -(-H_total // 8) * 8
    fc_cat = jnp.pad(fc_cat, ((0, Hpad - H_total), (0, 0)))
    bias = sum(s["fc_bias"] for s in branches_std) + params["final_b"]          # (C,)
    bias = jnp.pad(bias, (0, Cp - C)).reshape(1, Cp)
    fc_all = jnp.concatenate([fc_cat, bias], axis=0)                            # (Hpad+1, Cp)

    kernel = _make_detector_kernel(Bp, Cp, tuple(metas), H_total, Hpad)

    vmem = pl.BlockSpec(memory_space=pltpu.MemorySpace.VMEM)
    inputs = slabs + [fc_all]                                                   # 3 DMAs
    out = pl.pallas_call(
        kernel,
        out_shape=jax.ShapeDtypeStruct((Bp, Cp), jnp.float32),
        in_specs=[vmem] * len(inputs),
        out_specs=vmem,
    )(*inputs)
    return out[:B, :C]


# ----------------------------------------------------------------------------------
# Pure-JAX reference (matches torch nn.LSTM batch_first semantics, eval mode)
# ----------------------------------------------------------------------------------
def _lstm_ref(x_seq, p, H, L):
    B, T = x_seq.shape[0], x_seq.shape[1]
    h = [jnp.zeros((B, H), jnp.float32) for _ in range(L)]
    c = [jnp.zeros((B, H), jnp.float32) for _ in range(L)]
    for t in range(T):
        inp = x_seq[:, t, :]
        for l in range(L):
            g = (inp @ p["w_ih"][l].T + h[l] @ p["w_hh"][l].T
                 + p["b_ih"][l] + p["b_hh"][l])
            i = jax.nn.sigmoid(g[:, 0 * H:1 * H])
            f = jax.nn.sigmoid(g[:, 1 * H:2 * H])
            gg = jnp.tanh(g[:, 2 * H:3 * H])
            o = jax.nn.sigmoid(g[:, 3 * H:4 * H])
            c[l] = f * c[l] + i * gg
            h[l] = o * jnp.tanh(c[l])
            inp = h[l]
    return h[-1]


def reference_forward(tweet_tokens, metadata_x, desc_tokens, params):
    tw_p, md_p, ds_p = params["tweet"], params["meta"], params["desc"]
    Ht, Lt = tw_p["w_hh"][0].shape[1], len(tw_p["w_hh"])
    Hm, Lm = md_p["w_hh"][0].shape[1], len(md_p["w_hh"])
    Hd, Ld = ds_p["w_hh"][0].shape[1], len(ds_p["w_hh"])

    t_emb = jnp.take(tw_p["embedding"], tweet_tokens, axis=0)
    t_out = _lstm_ref(t_emb, tw_p, Ht, Lt) @ tw_p["fc_w"].T + tw_p["fc_b"]
    m_out = (_lstm_ref(metadata_x[:, None, :].astype(jnp.float32), md_p, Hm, Lm)
             @ md_p["fc_w"].T + md_p["fc_b"])
    d_emb = jnp.take(ds_p["embedding"], desc_tokens, axis=0)
    d_out = _lstm_ref(d_emb, ds_p, Hd, Ld) @ ds_p["fc_w"].T + ds_p["fc_b"]
    combined = jnp.concatenate([t_out, m_out, d_out], axis=1)
    return combined @ params["final_w"].T + params["final_b"]


# ----------------------------------------------------------------------------------
# Parameter init (mirrors the torch module's parameter structure)
# ----------------------------------------------------------------------------------
def _uniform(key, shape, k):
    return jax.random.uniform(key, shape, jnp.float32, -k, k)


def _init_lstm(key, in_dim, H, L, C, vocab=None, emb_dim=None):
    k = 1.0 / (H ** 0.5)
    keys = jax.random.split(key, 4 + 4 * L)
    idx = 0
    p = {"w_ih": [], "w_hh": [], "b_ih": [], "b_hh": []}
    if vocab is not None:
        p["embedding"] = jax.random.normal(keys[idx], (vocab, emb_dim), jnp.float32)
        idx += 1
    p["fc_w"] = _uniform(keys[idx], (C, H), k); idx += 1
    p["fc_b"] = _uniform(keys[idx], (C,), k); idx += 1
    for l in range(L):
        d = in_dim if l == 0 else H
        p["w_ih"].append(_uniform(keys[idx], (4 * H, d), k)); idx += 1
        p["w_hh"].append(_uniform(keys[idx], (4 * H, H), k)); idx += 1
        p["b_ih"].append(_uniform(keys[idx], (4 * H,), k)); idx += 1
        p["b_hh"].append(_uniform(keys[idx], (4 * H,), k)); idx += 1
    return p


if __name__ == "__main__":
    # Small shapes consistent with SocialBotDetector.
    B = 2
    num_classes = 4
    tweet_vocab, tweet_emb, tweet_hidden, tweet_layers, tweet_seq = 60, 16, 32, 2, 8
    meta_dim, meta_hidden, meta_layers = 10, 32, 2
    desc_vocab, desc_emb, desc_hidden, desc_layers, desc_seq = 50, 16, 32, 2, 8

    key = jax.random.PRNGKey(0)
    k_tw, k_md, k_ds, k_fw, k_fb, k_x1, k_x2, k_x3 = jax.random.split(key, 8)

    kf = 1.0 / ((3 * num_classes) ** 0.5)
    params = {
        "tweet": _init_lstm(k_tw, tweet_emb, tweet_hidden, tweet_layers, num_classes,
                            vocab=tweet_vocab, emb_dim=tweet_emb),
        "meta": _init_lstm(k_md, meta_dim, meta_hidden, meta_layers, num_classes),
        "desc": _init_lstm(k_ds, desc_emb, desc_hidden, desc_layers, num_classes,
                           vocab=desc_vocab, emb_dim=desc_emb),
        "final_w": _uniform(k_fw, (num_classes, 3 * num_classes), kf),
        "final_b": _uniform(k_fb, (num_classes,), kf),
    }

    tweet_tokens = jax.random.randint(k_x1, (B, tweet_seq), 0, tweet_vocab, jnp.int32)
    desc_tokens = jax.random.randint(k_x2, (B, desc_seq), 0, desc_vocab, jnp.int32)
    metadata_x = jax.random.normal(k_x3, (B, meta_dim), jnp.float32)

    out = social_bot_detector_forward(tweet_tokens, metadata_x, desc_tokens, params)
    out = jax.block_until_ready(out)

    ref = reference_forward(tweet_tokens, metadata_x, desc_tokens, params)
    assert out.shape == (B, num_classes), out.shape
    assert jnp.allclose(out, ref, atol=1e-4, rtol=1e-4), (out, ref)
    print("KERNEL_OK")
</pallas_src>

<mosaic_0001>
module attributes {stable_mosaic.version = 11 : i64} {
  func.func @kernel(%arg0: memref<264x256xf32, #tpu.memory_space<vmem>>, %arg1: memref<80x128xf32, #tpu.memory_space<vmem>>, %arg2: memref<97x128xf32, #tpu.memory_space<vmem>>, %arg3: memref<8x128xf32, #tpu.memory_space<vmem>>) attributes {dimension_semantics = [], scalar_prefetch = 0 : i64, scratch_operands = 0 : i64, tpu.core_type = #tpu.core_type<tc>} {
    %0 = tpu.iota {dimensions = array<i32: 1>} : vector<8x256xi32>
    %c128_i32 = arith.constant 128 : i32
    %1 = vector.broadcast %c128_i32 : i32 to vector<8x256xi32>
    %2 = arith.cmpi sge, %0, %1 : vector<8x256xi32>
    %c192_i32 = arith.constant 192 : i32
    %3 = vector.broadcast %c192_i32 : i32 to vector<8x256xi32>
    %4 = arith.cmpi slt, %0, %3 : vector<8x256xi32>
    %5 = arith.andi %2, %4 : vector<8x256xi1>
    %cst = arith.constant 2.000000e+00 : f32
    %cst_0 = arith.constant 1.000000e+00 : f32
    %6 = vector.broadcast %cst : f32 to vector<8x256xf32>
    %7 = vector.broadcast %cst_0 : f32 to vector<8x256xf32>
    %8 = arith.select %5, %6, %7 : vector<8x256xi1>, vector<8x256xf32>
    %cst_1 = arith.constant -1.000000e+00 : f32
    %cst_2 = arith.constant 0.000000e+00 : f32
    %9 = vector.broadcast %cst_1 : f32 to vector<8x256xf32>
    %10 = vector.broadcast %cst_2 : f32 to vector<8x256xf32>
    %11 = arith.select %5, %9, %10 : vector<8x256xi1>, vector<8x256xf32>
    %c128 = arith.constant 128 : index
    %c0 = arith.constant 0 : index
    %12 = vector.load %arg0[%c128, %c0] : memref<264x256xf32, #tpu.memory_space<vmem>>, vector<128x256xf32>
    %c256 = arith.constant 256 : index
    %c0_3 = arith.constant 0 : index
    %13 = vector.load %arg0[%c256, %c0_3] : memref<264x256xf32, #tpu.memory_space<vmem>>, vector<8x256xf32>
    %14 = vector.extract_strided_slice %12 {offsets = [0, 0], sizes = [64, 256], strides = [1, 1]} : vector<128x256xf32> to vector<64x256xf32>
    %c64 = arith.constant 64 : index
    %c0_4 = arith.constant 0 : index
    %15 = vector.load %arg0[%c64, %c0_4] : memref<264x256xf32, #tpu.memory_space<vmem>>, vector<64x256xf32>
    %c0_5 = arith.constant 0 : index
    %c0_6 = arith.constant 0 : index
    %16 = vector.load %arg0[%c0_5, %c0_6] : memref<264x256xf32, #tpu.memory_space<vmem>>, vector<8x256xf32>
    %17 = arith.negf %16 : vector<8x256xf32>
    %18 = math.exp %17 : vector<8x256xf32>
    %cst_7 = arith.constant 1.000000e+00 : f32
    %19 = vector.broadcast %cst_7 : f32 to vector<8x256xf32>
    %20 = arith.addf %19, %18 : vector<8x256xf32>
    %21 = arith.divf %19, %20 : vector<8x256xf32>
    %22 = arith.mulf %21, %8 : vector<8x256xf32>
    %23 = arith.addf %22, %11 : vector<8x256xf32>
    %24 = vector.extract_strided_slice %23 {offsets = [0, 0], sizes = [8, 64], strides = [1, 1]} : vector<8x256xf32> to vector<8x64xf32>
    %25 = vector.extract_strided_slice %23 {offsets = [0, 128], sizes = [8, 64], strides = [1, 1]} : vector<8x256xf32> to vector<8x64xf32>
    %26 = vector.extract_strided_slice %23 {offsets = [0, 192], sizes = [8, 64], strides = [1, 1]} : vector<8x256xf32> to vector<8x64xf32>
    %27 = arith.mulf %24, %25 : vector<8x64xf32>
    %28 = math.tanh %27 : vector<8x64xf32>
    %29 = arith.mulf %26, %28 : vector<8x64xf32>
    %cst_8 = arith.constant dense<0.000000e+00> : vector<8x256xf32>
    %30 = tpu.matmul %29, %14, %cst_8 {dimension_numbers = #tpu.dot_dimension_numbers<[1], [0], [0], [1], [0, 0, 1, 1], [], []>} : vector<8x64xf32>, vector<64x256xf32>, vector<8x256xf32> -> vector<8x256xf32>
    %31 = arith.addf %30, %13 : vector<8x256xf32>
    %32 = arith.negf %31 : vector<8x256xf32>
    %33 = math.exp %32 : vector<8x256xf32>
    %cst_9 = arith.constant 1.000000e+00 : f32
    %34 = vector.broadcast %cst_9 : f32 to vector<8x256xf32>
    %35 = arith.addf %34, %33 : vector<8x256xf32>
    %36 = arith.divf %34, %35 : vector<8x256xf32>
    %37 = arith.mulf %36, %8 : vector<8x256xf32>
    %38 = arith.addf %37, %11 : vector<8x256xf32>
    %39 = vector.extract_strided_slice %38 {offsets = [0, 0], sizes = [8, 64], strides = [1, 1]} : vector<8x256xf32> to vector<8x64xf32>
    %40 = vector.extract_strided_slice %38 {offsets = [0, 128], sizes = [8, 64], strides = [1, 1]} : vector<8x256xf32> to vector<8x64xf32>
    %41 = vector.extract_strided_slice %38 {offsets = [0, 192], sizes = [8, 64], strides = [1, 1]} : vector<8x256xf32> to vector<8x64xf32>
    %42 = arith.mulf %39, %40 : vector<8x64xf32>
    %43 = math.tanh %42 : vector<8x64xf32>
    %44 = arith.mulf %41, %43 : vector<8x64xf32>
    %c8 = arith.constant 8 : index
    %c0_10 = arith.constant 0 : index
    %45 = vector.load %arg0[%c8, %c0_10] : memref<264x256xf32, #tpu.memory_space<vmem>>, vector<8x256xf32>
    %cst_11 = arith.constant dense<0.000000e+00> : vector<8x256xf32>
    %46 = tpu.matmul %29, %15, %cst_11 {dimension_numbers = #tpu.dot_dimension_numbers<[1], [0], [0], [1], [0, 0, 1, 1], [], []>} : vector<8x64xf32>, vector<64x256xf32>, vector<8x256xf32> -> vector<8x256xf32>
    %47 = arith.addf %45, %46 : vector<8x256xf32>
    %48 = arith.negf %47 : vector<8x256xf32>
    %49 = math.exp %48 : vector<8x256xf32>
    %cst_12 = arith.constant 1.000000e+00 : f32
    %50 = vector.broadcast %cst_12 : f32 to vector<8x256xf32>
    %51 = arith.addf %50, %49 : vector<8x256xf32>
    %52 = arith.divf %50, %51 : vector<8x256xf32>
    %53 = arith.mulf %52, %8 : vector<8x256xf32>
    %54 = arith.addf %53, %11 : vector<8x256xf32>
    %55 = vector.extract_strided_slice %54 {offsets = [0, 0], sizes = [8, 64], strides = [1, 1]} : vector<8x256xf32> to vector<8x64xf32>
    %56 = vector.extract_strided_slice %54 {offsets = [0, 64], sizes = [8, 64], strides = [1, 1]} : vector<8x256xf32> to vector<8x64xf32>
    %57 = vector.extract_strided_slice %54 {offsets = [0, 128], sizes = [8, 64], strides = [1, 1]} : vector<8x256xf32> to vector<8x64xf32>
    %58 = vector.extract_strided_slice %54 {offsets = [0, 192], sizes = [8, 64], strides = [1, 1]} : vector<8x256xf32> to vector<8x64xf32>
    %59 = arith.mulf %56, %27 : vector<8x64xf32>
    %60 = arith.mulf %55, %57 : vector<8x64xf32>
    %61 = arith.addf %59, %60 : vector<8x64xf32>
    %62 = math.tanh %61 : vector<8x64xf32>
    %63 = arith.mulf %58, %62 : vector<8x64xf32>
    %64 = tpu.concatenate %63, %44 in 1 : vector<8x64xf32>, vector<8x64xf32> -> vector<8x128xf32>
    %cst_13 = arith.constant dense<0.000000e+00> : vector<8x256xf32>
    %65 = tpu.matmul %64, %12, %cst_13 {dimension_numbers = #tpu.dot_dimension_numbers<[1], [0], [0], [1], [0, 0, 1, 1], [], []>} : vector<8x128xf32>, vector<128x256xf32>, vector<8x256xf32> -> vector<8x256xf32>
    %66 = arith.addf %65, %13 : vector<8x256xf32>
    %67 = arith.negf %66 : vector<8x256xf32>
    %68 = math.exp %67 : vector<8x256xf32>
    %cst_14 = arith.constant 1.000000e+00 : f32
    %69 = vector.broadcast %cst_14 : f32 to vector<8x256xf32>
    %70 = arith.addf %69, %68 : vector<8x256xf32>
    %71 = arith.divf %69, %70 : vector<8x256xf32>
    %72 = arith.mulf %71, %8 : vector<8x256xf32>
    %73 = arith.addf %72, %11 : vector<8x256xf32>
    %74 = vector.extract_strided_slice %73 {offsets = [0, 0], sizes = [8, 64], strides = [1, 1]} : vector<8x256xf32> to vector<8x64xf32>
    %75 = vector.extract_strided_slice %73 {offsets = [0, 64], sizes = [8, 64], strides = [1, 1]} : vector<8x256xf32> to vector<8x64xf32>
    %76 = vector.extract_strided_slice %73 {offsets = [0, 128], sizes = [8, 64], strides = [1, 1]} : vector<8x256xf32> to vector<8x64xf32>
    %77 = vector.extract_strided_slice %73 {offsets = [0, 192], sizes = [8, 64], strides = [1, 1]} : vector<8x256xf32> to vector<8x64xf32>
    %78 = arith.mulf %75, %42 : vector<8x64xf32>
    %79 = arith.mulf %74, %76 : vector<8x64xf32>
    %80 = arith.addf %78, %79 : vector<8x64xf32>
    %81 = math.tanh %80 : vector<8x64xf32>
    %82 = arith.mulf %77, %81 : vector<8x64xf32>
    %c16 = arith.constant 16 : index
    %c0_15 = arith.constant 0 : index
    %83 = vector.load %arg0[%c16, %c0_15] : memref<264x256xf32, #tpu.memory_space<vmem>>, vector<8x256xf32>
    %cst_16 = arith.constant dense<0.000000e+00> : vector<8x256xf32>
    %84 = tpu.matmul %63, %15, %cst_16 {dimension_numbers = #tpu.dot_dimension_numbers<[1], [0], [0], [1], [0, 0, 1, 1], [], []>} : vector<8x64xf32>, vector<64x256xf32>, vector<8x256xf32> -> vector<8x256xf32>
    %85 = arith.addf %83, %84 : vector<8x256xf32>
    %86 = arith.negf %85 : vector<8x256xf32>
    %87 = math.exp %86 : vector<8x256xf32>
    %cst_17 = arith.constant 1.000000e+00 : f32
    %88 = vector.broadcast %cst_17 : f32 to vector<8x256xf32>
    %89 = arith.addf %88, %87 : vector<8x256xf32>
    %90 = arith.divf %88, %89 : vector<8x256xf32>
    %91 = arith.mulf %90, %8 : vector<8x256xf32>
    %92 = arith.addf %91, %11 : vector<8x256xf32>
    %93 = vector.extract_strided_slice %92 {offsets = [0, 0], sizes = [8, 64], strides = [1, 1]} : vector<8x256xf32> to vector<8x64xf32>
    %94 = vector.extract_strided_slice %92 {offsets = [0, 64], sizes = [8, 64], strides = [1, 1]} : vector<8x256xf32> to vector<8x64xf32>
    %95 = vector.extract_strided_slice %92 {offsets = [0, 128], sizes = [8, 64], strides = [1, 1]} : vector<8x256xf32> to vector<8x64xf32>
    %96 = vector.extract_strided_slice %92 {offsets = [0, 192], sizes = [8, 64], strides = [1, 1]} : vector<8x256xf32> to vector<8x64xf32>
    %97 = arith.mulf %94, %61 : vector<8x64xf32>
    %98 = arith.mulf %93, %95 : vector<8x64xf32>
    %99 = arith.addf %97, %98 : vector<8x64xf32>
    %100 = math.tanh %99 : vector<8x64xf32>
    %101 = arith.mulf %96, %100 : vector<8x64xf32>
    %102 = tpu.concatenate %101, %82 in 1 : vector<8x64xf32>, vector<8x64xf32> -> vector<8x128xf32>
    %cst_18 = arith.constant dense<0.000000e+00> : vector<8x256xf32>
    %103 = tpu.matmul %102, %12, %cst_18 {dimension_numbers = #tpu.dot_dimension_numbers<[1], [0], [0], [1], [0, 0, 1, 1], [], []>} : vector<8x128xf32>, vector<128x256xf32>, vector<8x256xf32> -> vector<8x256xf32>
    %104 = arith.addf %103, %13 : vector<8x256xf32>
    %105 = arith.negf %104 : vector<8x256xf32>
    %106 = math.exp %105 : vector<8x256xf32>
    %cst_19 = arith.constant 1.000000e+00 : f32
    %107 = vector.broadcast %cst_19 : f32 to vector<8x256xf32>
    %108 = arith.addf %107, %106 : vector<8x256xf32>
    %109 = arith.divf %107, %108 : vector<8x256xf32>
    %110 = arith.mulf %109, %8 : vector<8x256xf32>
    %111 = arith.addf %110, %11 : vector<8x256xf32>
    %112 = vector.extract_strided_slice %111 {offsets = [0, 0], sizes = [8, 64], strides = [1, 1]} : vector<8x256xf32> to vector<8x64xf32>
    %113 = vector.extract_strided_slice %111 {offsets = [0, 64], sizes = [8, 64], strides = [1, 1]} : vector<8x256xf32> to vector<8x64xf32>
    %114 = vector.extract_strided_slice %111 {offsets = [0, 128], sizes = [8, 64], strides = [1, 1]} : vector<8x256xf32> to vector<8x64xf32>
    %115 = vector.extract_strided_slice %111 {offsets = [0, 192], sizes = [8, 64], strides = [1, 1]} : vector<8x256xf32> to vector<8x64xf32>
    %116 = arith.mulf %113, %80 : vector<8x64xf32>
    %117 = arith.mulf %112, %114 : vector<8x64xf32>
    %118 = arith.addf %116, %117 : vector<8x64xf32>
    %119 = math.tanh %118 : vector<8x64xf32>
    %120 = arith.mulf %115, %119 : vector<8x64xf32>
    %c24 = arith.constant 24 : index
    %c0_20 = arith.constant 0 : index
    %121 = vector.load %arg0[%c24, %c0_20] : memref<264x256xf32, #tpu.memory_space<vmem>>, vector<8x256xf32>
    %cst_21 = arith.constant dense<0.000000e+00> : vector<8x256xf32>
    %122 = tpu.matmul %101, %15, %cst_21 {dimension_numbers = #tpu.dot_dimension_numbers<[1], [0], [0], [1], [0, 0, 1, 1], [], []>} : vector<8x64xf32>, vector<64x256xf32>, vector<8x256xf32> -> vector<8x256xf32>
    %123 = arith.addf %121, %122 : vector<8x256xf32>
    %124 = arith.negf %123 : vector<8x256xf32>
    %125 = math.exp %124 : vector<8x256xf32>
    %cst_22 = arith.constant 1.000000e+00 : f32
    %126 = vector.broadcast %cst_22 : f32 to vector<8x256xf32>
    %127 = arith.addf %126, %125 : vector<8x256xf32>
    %128 = arith.divf %126, %127 : vector<8x256xf32>
    %129 = arith.mulf %128, %8 : vector<8x256xf32>
    %130 = arith.addf %129, %11 : vector<8x256xf32>
    %131 = vector.extract_strided_slice %130 {offsets = [0, 0], sizes = [8, 64], strides = [1, 1]} : vector<8x256xf32> to vector<8x64xf32>
    %132 = vector.extract_strided_slice %130 {offsets = [0, 64], sizes = [8, 64], strides = [1, 1]} : vector<8x256xf32> to vector<8x64xf32>
    %133 = vector.extract_strided_slice %130 {offsets = [0, 128], sizes = [8, 64], strides = [1, 1]} : vector<8x256xf32> to vector<8x64xf32>
    %134 = vector.extract_strided_slice %130 {offsets = [0, 192], sizes = [8, 64], strides = [1, 1]} : vector<8x256xf32> to vector<8x64xf32>
    %135 = arith.mulf %132, %99 : vector<8x64xf32>
    %136 = arith.mulf %131, %133 : vector<8x64xf32>
    %137 = arith.addf %135, %136 : vector<8x64xf32>
    %138 = math.tanh %137 : vector<8x64xf32>
    %139 = arith.mulf %134, %138 : vector<8x64xf32>
    %140 = tpu.concatenate %139, %120 in 1 : vector<8x64xf32>, vector<8x64xf32> -> vector<8x128xf32>
    %cst_23 = arith.constant dense<0.000000e+00> : vector<8x256xf32>
    %141 = tpu.matmul %140, %12, %cst_23 {dimension_numbers = #tpu.dot_dimension_numbers<[1], [0], [0], [1], [0, 0, 1, 1], [], []>} : vector<8x128xf32>, vector<128x256xf32>, vector<8x256xf32> -> vector<8x256xf32>
    %142 = arith.addf %141, %13 : vector<8x256xf32>
    %143 = arith.negf %142 : vector<8x256xf32>
    %144 = math.exp %143 : vector<8x256xf32>
    %cst_24 = arith.constant 1.000000e+00 : f32
    %145 = vector.broadcast %cst_24 : f32 to vector<8x256xf32>
    %146 = arith.addf %145, %144 : vector<8x256xf32>
    %147 = arith.divf %145, %146 : vector<8x256xf32>
    %148 = arith.mulf %147, %8 : vector<8x256xf32>
    %149 = arith.addf %148, %11 : vector<8x256xf32>
    %150 = vector.extract_strided_slice %149 {offsets = [0, 0], sizes = [8, 64], strides = [1, 1]} : vector<8x256xf32> to vector<8x64xf32>
    %151 = vector.extract_strided_slice %149 {offsets = [0, 64], sizes = [8, 64], strides = [1, 1]} : vector<8x256xf32> to vector<8x64xf32>
    %152 = vector.extract_strided_slice %149 {offsets = [0, 128], sizes = [8, 64], strides = [1, 1]} : vector<8x256xf32> to vector<8x64xf32>
    %153 = vector.extract_strided_slice %149 {offsets = [0, 192], sizes = [8, 64], strides = [1, 1]} : vector<8x256xf32> to vector<8x64xf32>
    %154 = arith.mulf %151, %118 : vector<8x64xf32>
    %155 = arith.mulf %150, %152 : vector<8x64xf32>
    %156 = arith.addf %154, %155 : vector<8x64xf32>
    %157 = math.tanh %156 : vector<8x64xf32>
    %158 = arith.mulf %153, %157 : vector<8x64xf32>
    %c32 = arith.constant 32 : index
    %c0_25 = arith.constant 0 : index
    %159 = vector.load %arg0[%c32, %c0_25] : memref<264x256xf32, #tpu.memory_space<vmem>>, vector<8x256xf32>
    %cst_26 = arith.constant dense<0.000000e+00> : vector<8x256xf32>
    %160 = tpu.matmul %139, %15, %cst_26 {dimension_numbers = #tpu.dot_dimension_numbers<[1], [0], [0], [1], [0, 0, 1, 1], [], []>} : vector<8x64xf32>, vector<64x256xf32>, vector<8x256xf32> -> vector<8x256xf32>
    %161 = arith.addf %159, %160 : vector<8x256xf32>
    %162 = arith.negf %161 : vector<8x256xf32>
    %163 = math.exp %162 : vector<8x256xf32>
    %cst_27 = arith.constant 1.000000e+00 : f32
    %164 = vector.broadcast %cst_27 : f32 to vector<8x256xf32>
    %165 = arith.addf %164, %163 : vector<8x256xf32>
    %166 = arith.divf %164, %165 : vector<8x256xf32>
    %167 = arith.mulf %166, %8 : vector<8x256xf32>
    %168 = arith.addf %167, %11 : vector<8x256xf32>
    %169 = vector.extract_strided_slice %168 {offsets = [0, 0], sizes = [8, 64], strides = [1, 1]} : vector<8x256xf32> to vector<8x64xf32>
    %170 = vector.extract_strided_slice %168 {offsets = [0, 64], sizes = [8, 64], strides = [1, 1]} : vector<8x256xf32> to vector<8x64xf32>
    %171 = vector.extract_strided_slice %168 {offsets = [0, 128], sizes = [8, 64], strides = [1, 1]} : vector<8x256xf32> to vector<8x64xf32>
    %172 = vector.extract_strided_slice %168 {offsets = [0, 192], sizes = [8, 64], strides = [1, 1]} : vector<8x256xf32> to vector<8x64xf32>
    %173 = arith.mulf %170, %137 : vector<8x64xf32>
    %174 = arith.mulf %169, %171 : vector<8x64xf32>
    %175 = arith.addf %173, %174 : vector<8x64xf32>
    %176 = math.tanh %175 : vector<8x64xf32>
    %177 = arith.mulf %172, %176 : vector<8x64xf32>
    %178 = tpu.concatenate %177, %158 in 1 : vector<8x64xf32>, vector<8x64xf32> -> vector<8x128xf32>
    %cst_28 = arith.constant dense<0.000000e+00> : vector<8x256xf32>
    %179 = tpu.matmul %178, %12, %cst_28 {dimension_numbers = #tpu.dot_dimension_numbers<[1], [0], [0], [1], [0, 0, 1, 1], [], []>} : vector<8x128xf32>, vector<128x256xf32>, vector<8x256xf32> -> vector<8x256xf32>
    %180 = arith.addf %179, %13 : vector<8x256xf32>
    %181 = arith.negf %180 : vector<8x256xf32>
    %182 = math.exp %181 : vector<8x256xf32>
    %cst_29 = arith.constant 1.000000e+00 : f32
    %183 = vector.broadcast %cst_29 : f32 to vector<8x256xf32>
    %184 = arith.addf %183, %182 : vector<8x256xf32>
    %185 = arith.divf %183, %184 : vector<8x256xf32>
    %186 = arith.mulf %185, %8 : vector<8x256xf32>
    %187 = arith.addf %186, %11 : vector<8x256xf32>
    %188 = vector.extract_strided_slice %187 {offsets = [0, 0], sizes = [8, 64], strides = [1, 1]} : vector<8x256xf32> to vector<8x64xf32>
    %189 = vector.extract_strided_slice %187 {offsets = [0, 64], sizes = [8, 64], strides = [1, 1]} : vector<8x256xf32> to vector<8x64xf32>
    %190 = vector.extract_strided_slice %187 {offsets = [0, 128], sizes = [8, 64], strides = [1, 1]} : vector<8x256xf32> to vector<8x64xf32>
    %191 = vector.extract_strided_slice %187 {offsets = [0, 192], sizes = [8, 64], strides = [1, 1]} : vector<8x256xf32> to vector<8x64xf32>
    %192 = arith.mulf %189, %156 : vector<8x64xf32>
    %193 = arith.mulf %188, %190 : vector<8x64xf32>
    %194 = arith.addf %192, %193 : vector<8x64xf32>
    %195 = math.tanh %194 : vector<8x64xf32>
    %196 = arith.mulf %191, %195 : vector<8x64xf32>
    %c40 = arith.constant 40 : index
    %c0_30 = arith.constant 0 : index
    %197 = vector.load %arg0[%c40, %c0_30] : memref<264x256xf32, #tpu.memory_space<vmem>>, vector<8x256xf32>
    %cst_31 = arith.constant dense<0.000000e+00> : vector<8x256xf32>
    %198 = tpu.matmul %177, %15, %cst_31 {dimension_numbers = #tpu.dot_dimension_numbers<[1], [0], [0], [1], [0, 0, 1, 1], [], []>} : vector<8x64xf32>, vector<64x256xf32>, vector<8x256xf32> -> vector<8x256xf32>
    %199 = arith.addf %197, %198 : vector<8x256xf32>
    %200 = arith.negf %199 : vector<8x256xf32>
    %201 = math.exp %200 : vector<8x256xf32>
    %cst_32 = arith.constant 1.000000e+00 : f32
    %202 = vector.broadcast %cst_32 : f32 to vector<8x256xf32>
    %203 = arith.addf %202, %201 : vector<8x256xf32>
    %204 = arith.divf %202, %203 : vector<8x256xf32>
    %205 = arith.mulf %204, %8 : vector<8x256xf32>
    %206 = arith.addf %205, %11 : vector<8x256xf32>
    %207 = vector.extract_strided_slice %206 {offsets = [0, 0], sizes = [8, 64], strides = [1, 1]} : vector<8x256xf32> to vector<8x64xf32>
    %208 = vector.extract_strided_slice %206 {offsets = [0, 64], sizes = [8, 64], strides = [1, 1]} : vector<8x256xf32> to vector<8x64xf32>
    %209 = vector.extract_strided_slice %206 {offsets = [0, 128], sizes = [8, 64], strides = [1, 1]} : vector<8x256xf32> to vector<8x64xf32>
    %210 = vector.extract_strided_slice %206 {offsets = [0, 192], sizes = [8, 64], strides = [1, 1]} : vector<8x256xf32> to vector<8x64xf32>
    %211 = arith.mulf %208, %175 : vector<8x64xf32>
    %212 = arith.mulf %207, %209 : vector<8x64xf32>
    %213 = arith.addf %211, %212 : vector<8x64xf32>
    %214 = math.tanh %213 : vector<8x64xf32>
    %215 = arith.mulf %210, %214 : vector<8x64xf32>
    %216 = tpu.concatenate %215, %196 in 1 : vector<8x64xf32>, vector<8x64xf32> -> vector<8x128xf32>
    %cst_33 = arith.constant dense<0.000000e+00> : vector<8x256xf32>
    %217 = tpu.matmul %216, %12, %cst_33 {dimension_numbers = #tpu.dot_dimension_numbers<[1], [0], [0], [1], [0, 0, 1, 1], [], []>} : vector<8x128xf32>, vector<128x256xf32>, vector<8x256xf32> -> vector<8x256xf32>
    %218 = arith.addf %217, %13 : vector<8x256xf32>
    %219 = arith.negf %218 : vector<8x256xf32>
    %220 = math.exp %219 : vector<8x256xf32>
    %cst_34 = arith.constant 1.000000e+00 : f32
    %221 = vector.broadcast %cst_34 : f32 to vector<8x256xf32>
    %222 = arith.addf %221, %220 : vector<8x256xf32>
    %223 = arith.divf %221, %222 : vector<8x256xf32>
    %224 = arith.mulf %223, %8 : vector<8x256xf32>
    %225 = arith.addf %224, %11 : vector<8x256xf32>
    %226 = vector.extract_strided_slice %225 {offsets = [0, 0], sizes = [8, 64], strides = [1, 1]} : vector<8x256xf32> to vector<8x64xf32>
    %227 = vector.extract_strided_slice %225 {offsets = [0, 64], sizes = [8, 64], strides = [1, 1]} : vector<8x256xf32> to vector<8x64xf32>
    %228 = vector.extract_strided_slice %225 {offsets = [0, 128], sizes = [8, 64], strides = [1, 1]} : vector<8x256xf32> to vector<8x64xf32>
    %229 = vector.extract_strided_slice %225 {offsets = [0, 192], sizes = [8, 64], strides = [1, 1]} : vector<8x256xf32> to vector<8x64xf32>
    %230 = arith.mulf %227, %194 : vector<8x64xf32>
    %231 = arith.mulf %226, %228 : vector<8x64xf32>
    %232 = arith.addf %230, %231 : vector<8x64xf32>
    %233 = math.tanh %232 : vector<8x64xf32>
    %234 = arith.mulf %229, %233 : vector<8x64xf32>
    %c48 = arith.constant 48 : index
    %c0_35 = arith.constant 0 : index
    %235 = vector.load %arg0[%c48, %c0_35] : memref<264x256xf32, #tpu.memory_space<vmem>>, vector<8x256xf32>
    %cst_36 = arith.constant dense<0.000000e+00> : vector<8x256xf32>
    %236 = tpu.matmul %215, %15, %cst_36 {dimension_numbers = #tpu.dot_dimension_numbers<[1], [0], [0], [1], [0, 0, 1, 1], [], []>} : vector<8x64xf32>, vector<64x256xf32>, vector<8x256xf32> -> vector<8x256xf32>
    %237 = arith.addf %235, %236 : vector<8x256xf32>
    %238 = arith.negf %237 : vector<8x256xf32>
    %239 = math.exp %238 : vector<8x256xf32>
    %cst_37 = arith.constant 1.000000e+00 : f32
    %240 = vector.broadcast %cst_37 : f32 to vector<8x256xf32>
    %241 = arith.addf %240, %239 : vector<8x256xf32>
    %242 = arith.divf %240, %241 : vector<8x256xf32>
    %243 = arith.mulf %242, %8 : vector<8x256xf32>
    %244 = arith.addf %243, %11 : vector<8x256xf32>
    %245 = vector.extract_strided_slice %244 {offsets = [0, 0], sizes = [8, 64], strides = [1, 1]} : vector<8x256xf32> to vector<8x64xf32>
    %246 = vector.extract_strided_slice %244 {offsets = [0, 64], sizes = [8, 64], strides = [1, 1]} : vector<8x256xf32> to vector<8x64xf32>
    %247 = vector.extract_strided_slice %244 {offsets = [0, 128], sizes = [8, 64], strides = [1, 1]} : vector<8x256xf32> to vector<8x64xf32>
    %248 = vector.extract_strided_slice %244 {offsets = [0, 192], sizes = [8, 64], strides = [1, 1]} : vector<8x256xf32> to vector<8x64xf32>
    %249 = arith.mulf %246, %213 : vector<8x64xf32>
    %250 = arith.mulf %245, %247 : vector<8x64xf32>
    %251 = arith.addf %249, %250 : vector<8x64xf32>
    %252 = math.tanh %251 : vector<8x64xf32>
    %253 = arith.mulf %248, %252 : vector<8x64xf32>
    %254 = tpu.concatenate %253, %234 in 1 : vector<8x64xf32>, vector<8x64xf32> -> vector<8x128xf32>
    %cst_38 = arith.constant dense<0.000000e+00> : vector<8x256xf32>
    %255 = tpu.matmul %254, %12, %cst_38 {dimension_numbers = #tpu.dot_dimension_numbers<[1], [0], [0], [1], [0, 0, 1, 1], [], []>} : vector<8x128xf32>, vector<128x256xf32>, vector<8x256xf32> -> vector<8x256xf32>
    %256 = arith.addf %255, %13 : vector<8x256xf32>
    %257 = arith.negf %256 : vector<8x256xf32>
    %258 = math.exp %257 : vector<8x256xf32>
    %cst_39 = arith.constant 1.000000e+00 : f32
    %259 = vector.broadcast %cst_39 : f32 to vector<8x256xf32>
    %260 = arith.addf %259, %258 : vector<8x256xf32>
    %261 = arith.divf %259, %260 : vector<8x256xf32>
    %262 = arith.mulf %261, %8 : vector<8x256xf32>
    %263 = arith.addf %262, %11 : vector<8x256xf32>
    %264 = vector.extract_strided_slice %263 {offsets = [0, 0], sizes = [8, 64], strides = [1, 1]} : vector<8x256xf32> to vector<8x64xf32>
    %265 = vector.extract_strided_slice %263 {offsets = [0, 64], sizes = [8, 64], strides = [1, 1]} : vector<8x256xf32> to vector<8x64xf32>
    %266 = vector.extract_strided_slice %263 {offsets = [0, 128], sizes = [8, 64], strides = [1, 1]} : vector<8x256xf32> to vector<8x64xf32>
    %267 = vector.extract_strided_slice %263 {offsets = [0, 192], sizes = [8, 64], strides = [1, 1]} : vector<8x256xf32> to vector<8x64xf32>
    %268 = arith.mulf %265, %232 : vector<8x64xf32>
    %269 = arith.mulf %264, %266 : vector<8x64xf32>
    %270 = arith.addf %268, %269 : vector<8x64xf32>
    %271 = math.tanh %270 : vector<8x64xf32>
    %272 = arith.mulf %267, %271 : vector<8x64xf32>
    %c56 = arith.constant 56 : index
    %c0_40 = arith.constant 0 : index
    %273 = vector.load %arg0[%c56, %c0_40] : memref<264x256xf32, #tpu.memory_space<vmem>>, vector<8x256xf32>
    %cst_41 = arith.constant dense<0.000000e+00> : vector<8x256xf32>
    %274 = tpu.matmul %253, %15, %cst_41 {dimension_numbers = #tpu.dot_dimension_numbers<[1], [0], [0], [1], [0, 0, 1, 1], [], []>} : vector<8x64xf32>, vector<64x256xf32>, vector<8x256xf32> -> vector<8x256xf32>
    %275 = arith.addf %273, %274 : vector<8x256xf32>
    %276 = arith.negf %275 : vector<8x256xf32>
    %277 = math.exp %276 : vector<8x256xf32>
    %cst_42 = arith.constant 1.000000e+00 : f32
    %278 = vector.broadcast %cst_42 : f32 to vector<8x256xf32>
    %279 = arith.addf %278, %277 : vector<8x256xf32>
    %280 = arith.divf %278, %279 : vector<8x256xf32>
    %281 = arith.mulf %280, %8 : vector<8x256xf32>
    %282 = arith.addf %281, %11 : vector<8x256xf32>
    %283 = vector.extract_strided_slice %282 {offsets = [0, 0], sizes = [8, 64], strides = [1, 1]} : vector<8x256xf32> to vector<8x64xf32>
    %284 = vector.extract_strided_slice %282 {offsets = [0, 64], sizes = [8, 64], strides = [1, 1]} : vector<8x256xf32> to vector<8x64xf32>
    %285 = vector.extract_strided_slice %282 {offsets = [0, 128], sizes = [8, 64], strides = [1, 1]} : vector<8x256xf32> to vector<8x64xf32>
    %286 = vector.extract_strided_slice %282 {offsets = [0, 192], sizes = [8, 64], strides = [1, 1]} : vector<8x256xf32> to vector<8x64xf32>
    %287 = arith.mulf %284, %251 : vector<8x64xf32>
    %288 = arith.mulf %283, %285 : vector<8x64xf32>
    %289 = arith.addf %287, %288 : vector<8x64xf32>
    %290 = math.tanh %289 : vector<8x64xf32>
    %291 = arith.mulf %286, %290 : vector<8x64xf32>
    %292 = tpu.concatenate %291, %272 in 1 : vector<8x64xf32>, vector<8x64xf32> -> vector<8x128xf32>
    %cst_43 = arith.constant dense<0.000000e+00> : vector<8x256xf32>
    %293 = tpu.matmul %292, %12, %cst_43 {dimension_numbers = #tpu.dot_dimension_numbers<[1], [0], [0], [1], [0, 0, 1, 1], [], []>} : vector<8x128xf32>, vector<128x256xf32>, vector<8x256xf32> -> vector<8x256xf32>
    %294 = arith.addf %293, %13 : vector<8x256xf32>
    %295 = arith.negf %294 : vector<8x256xf32>
    %296 = math.exp %295 : vector<8x256xf32>
    %cst_44 = arith.constant 1.000000e+00 : f32
    %297 = vector.broadcast %cst_44 : f32 to vector<8x256xf32>
    %298 = arith.addf %297, %296 : vector<8x256xf32>
    %299 = arith.divf %297, %298 : vector<8x256xf32>
    %300 = arith.mulf %299, %8 : vector<8x256xf32>
    %301 = arith.addf %300, %11 : vector<8x256xf32>
    %302 = vector.extract_strided_slice %301 {offsets = [0, 0], sizes = [8, 64], strides = [1, 1]} : vector<8x256xf32> to vector<8x64xf32>
    %303 = vector.extract_strided_slice %301 {offsets = [0, 64], sizes = [8, 64], strides = [1, 1]} : vector<8x256xf32> to vector<8x64xf32>
    %304 = vector.extract_strided_slice %301 {offsets = [0, 128], sizes = [8, 64], strides = [1, 1]} : vector<8x256xf32> to vector<8x64xf32>
    %305 = vector.extract_strided_slice %301 {offsets = [0, 192], sizes = [8, 64], strides = [1, 1]} : vector<8x256xf32> to vector<8x64xf32>
    %306 = arith.mulf %303, %270 : vector<8x64xf32>
    %307 = arith.mulf %302, %304 : vector<8x64xf32>
    %308 = arith.addf %306, %307 : vector<8x64xf32>
    %309 = math.tanh %308 : vector<8x64xf32>
    %310 = arith.mulf %305, %309 : vector<8x64xf32>
    %311 = tpu.iota {dimensions = array<i32: 1>} : vector<8x128xi32>
    %c64_i32 = arith.constant 64 : i32
    %312 = vector.broadcast %c64_i32 : i32 to vector<8x128xi32>
    %313 = arith.cmpi sge, %311, %312 : vector<8x128xi32>
    %c96_i32 = arith.constant 96 : i32
    %314 = vector.broadcast %c96_i32 : i32 to vector<8x128xi32>
    %315 = arith.cmpi slt, %311, %314 : vector<8x128xi32>
    %316 = arith.andi %313, %315 : vector<8x128xi1>
    %cst_45 = arith.constant 2.000000e+00 : f32
    %cst_46 = arith.constant 1.000000e+00 : f32
    %317 = vector.broadcast %cst_45 : f32 to vector<8x128xf32>
    %318 = vector.broadcast %cst_46 : f32 to vector<8x128xf32>
    %319 = arith.select %316, %317, %318 : vector<8x128xi1>, vector<8x128xf32>
    %cst_47 = arith.constant -1.000000e+00 : f32
    %cst_48 = arith.constant 0.000000e+00 : f32
    %320 = vector.broadcast %cst_47 : f32 to vector<8x128xf32>
    %321 = vector.broadcast %cst_48 : f32 to vector<8x128xf32>
    %322 = arith.select %316, %320, %321 : vector<8x128xi1>, vector<8x128xf32>
    %c8_49 = arith.constant 8 : index
    %c0_50 = arith.constant 0 : index
    %323 = vector.load %arg1[%c8_49, %c0_50] : memref<80x128xf32, #tpu.memory_space<vmem>>, vector<64x128xf32>
    %c72 = arith.constant 72 : index
    %c0_51 = arith.constant 0 : index
    %324 = vector.load %arg1[%c72, %c0_51] : memref<80x128xf32, #tpu.memory_space<vmem>>, vector<8x128xf32>
    %325 = vector.extract_strided_slice %323 {offsets = [0, 0], sizes = [32, 128], strides = [1, 1]} : vector<64x128xf32> to vector<32x128xf32>
    %c0_52 = arith.constant 0 : index
    %c0_53 = arith.constant 0 : index
    %326 = vector.load %arg1[%c0_52, %c0_53] : memref<80x128xf32, #tpu.memory_space<vmem>>, vector<8x128xf32>
    %327 = arith.negf %326 : vector<8x128xf32>
    %328 = math.exp %327 : vector<8x128xf32>
    %cst_54 = arith.constant 1.000000e+00 : f32
    %329 = vector.broadcast %cst_54 : f32 to vector<8x128xf32>
    %330 = arith.addf %329, %328 : vector<8x128xf32>
    %331 = arith.divf %329, %330 : vector<8x128xf32>
    %332 = arith.mulf %331, %319 : vector<8x128xf32>
    %333 = arith.addf %332, %322 : vector<8x128xf32>
    %334 = vector.extract_strided_slice %333 {offsets = [0, 0], sizes = [8, 32], strides = [1, 1]} : vector<8x128xf32> to vector<8x32xf32>
    %335 = vector.extract_strided_slice %333 {offsets = [0, 64], sizes = [8, 32], strides = [1, 1]} : vector<8x128xf32> to vector<8x32xf32>
    %336 = vector.extract_strided_slice %333 {offsets = [0, 96], sizes = [8, 32], strides = [1, 1]} : vector<8x128xf32> to vector<8x32xf32>
    %337 = arith.mulf %334, %335 : vector<8x32xf32>
    %338 = math.tanh %337 : vector<8x32xf32>
    %339 = arith.mulf %336, %338 : vector<8x32xf32>
    %cst_55 = arith.constant dense<0.000000e+00> : vector<8x128xf32>
    %340 = tpu.matmul %339, %325, %cst_55 {dimension_numbers = #tpu.dot_dimension_numbers<[1], [0], [0], [1], [0, 0, 1, 1], [], []>} : vector<8x32xf32>, vector<32x128xf32>, vector<8x128xf32> -> vector<8x128xf32>
    %341 = arith.addf %340, %324 : vector<8x128xf32>
    %342 = arith.negf %341 : vector<8x128xf32>
    %343 = math.exp %342 : vector<8x128xf32>
    %cst_56 = arith.constant 1.000000e+00 : f32
    %344 = vector.broadcast %cst_56 : f32 to vector<8x128xf32>
    %345 = arith.addf %344, %343 : vector<8x128xf32>
    %346 = arith.divf %344, %345 : vector<8x128xf32>
    %347 = arith.mulf %346, %319 : vector<8x128xf32>
    %348 = arith.addf %347, %322 : vector<8x128xf32>
    %349 = vector.extract_strided_slice %348 {offsets = [0, 0], sizes = [8, 32], strides = [1, 1]} : vector<8x128xf32> to vector<8x32xf32>
    %350 = vector.extract_strided_slice %348 {offsets = [0, 64], sizes = [8, 32], strides = [1, 1]} : vector<8x128xf32> to vector<8x32xf32>
    %351 = vector.extract_strided_slice %348 {offsets = [0, 96], sizes = [8, 32], strides = [1, 1]} : vector<8x128xf32> to vector<8x32xf32>
    %352 = arith.mulf %349, %350 : vector<8x32xf32>
    %353 = math.tanh %352 : vector<8x32xf32>
    %354 = arith.mulf %351, %353 : vector<8x32xf32>
    %355 = tpu.concatenate %310, %354 in 1 : vector<8x64xf32>, vector<8x32xf32> -> vector<8x96xf32>
    %c0_57 = arith.constant 0 : index
    %c0_58 = arith.constant 0 : index
    %356 = vector.load %arg2[%c0_57, %c0_58] : memref<97x128xf32, #tpu.memory_space<vmem>>, vector<96x128xf32>
    %c96 = arith.constant 96 : index
    %c0_59 = arith.constant 0 : index
    %357 = vector.load %arg2[%c96, %c0_59] : memref<97x128xf32, #tpu.memory_space<vmem>>, vector<1x128xf32>
    %cst_60 = arith.constant dense<0.000000e+00> : vector<8x128xf32>
    %358 = tpu.matmul %355, %356, %cst_60 {dimension_numbers = #tpu.dot_dimension_numbers<[1], [0], [0], [1], [0, 0, 1, 1], [], []>} : vector<8x96xf32>, vector<96x128xf32>, vector<8x128xf32> -> vector<8x128xf32>
    %359 = vector.broadcast %357 : vector<1x128xf32> to vector<8x128xf32>
    %360 = arith.addf %358, %359 : vector<8x128xf32>
    %c0_61 = arith.constant 0 : index
    %c0_62 = arith.constant 0 : index
    %361 = vector.load %arg3[%c0_61, %c0_62] : memref<8x128xf32, #tpu.memory_space<vmem>>, vector<8x128xf32>
    tpu.vector_store %arg3[%c0_61, %c0_62], %360 {strides = array<i32>} : memref<8x128xf32, #tpu.memory_space<vmem>>, vector<8x128xf32>,
    return
  }
}

</mosaic_0001>

<llo_original>
// kernel: tpu_custom_call.1
$region0: #{tpu_custom_call.1}
  #allocation0 [shape = 'u32[]', space=smem, size = 0x4, offset = 0x4, fixed_abs, tag = 'smem constant byte address 0x4 - core index']
  #allocation1 [shape = 'u32[144,128]{1,0:T(1,128)}', space=vmem, size = 0x12000, scoped, tag = 'internal scratch']
  %s0 = inlined_call_operand.hbm [shape: f32[264,256], index: 0, kind: input, shape index: {}]
  %s1 = inlined_call_operand.hbm [shape: f32[80,128], index: 1, kind: input, shape index: {}]
  %s2 = inlined_call_operand.hbm [shape: f32[97,128], index: 2, kind: input, shape index: {}]
  %s3 = inlined_call_operand.hbm [shape: f32[8,128], index: 3, kind: output, shape index: {}]
  %s4 = sld [smem:[#allocation0]]
  $region34: #{tpu_custom_call.1} parent=0
    _
  %s6 = ssub.s32 1, %s4
  %s7 = scalar_select 0, %s6, %s4
  $region1: #{tpu_custom_call.1} parent=0
    #allocation2 [shape = 'u8[270336]{0}', space=vmem, size = 0x42000, scoped, tag = 'input window, operand 0, single buffered']
    #allocation3 [shape = 's32[1]{0}', space=sflag, size = 0x4, scoped, tag = 'scoped memory for tpu_custom_call.1']
    #allocation4 [shape = 's32[1]{0}', space=sflag, size = 0x4, scoped, tag = 'scoped memory for tpu_custom_call.1']
    #allocation5 [shape = 'u8[40960]{0}', space=vmem, size = 0xa000, scoped, tag = 'input window, operand 1, single buffered']
    #allocation6 [shape = 's32[1]{0}', space=sflag, size = 0x4, scoped, tag = 'scoped memory for tpu_custom_call.1']
    #allocation7 [shape = 'u8[53248]{0}', space=vmem, size = 0xd000, scoped, tag = 'input window, operand 2, single buffered']
    #allocation8 [shape = 'u8[4096]{0}', space=vmem, size = 0x1000, scoped, tag = 'output window, operand 0, single buffered']
    %8 = vsyncpa [#allocation3], 0
    %9 = vsyncpa [#allocation6], 0
    %10 = vsyncpa [#allocation4], 0
    // Predicated region
    $region2: #{tpu_custom_call.1} parent=1 // pred_check
      _
    $region3: #{tpu_custom_call.1} parent=1 // pred_check_branch
      %12 = sbr.rel (0) target = $region5
    $region4: #{tpu_custom_call.1} parent=1 // pred_region
      %s14 = ssub.s32 8448, 8448
      %15 = vsyncadd [#allocation3], %s14
      %s16 = sshll.u32 [#allocation2], 4
      %s17 = int_to_ptr.vmem [resolvable:$true] %s16
      %22 = dma.hbm_to_vmem [thread:$0]  %s0, 8448, %s17, [#allocation3], 256, 256, 16
    $region5: #{tpu_custom_call.1} parent=1 // pred_fallthru
      _
    // Predicated region
    $region6: #{tpu_custom_call.1} parent=1 // pred_check
      _
    $region7: #{tpu_custom_call.1} parent=1 // pred_check_branch
      %24 = sbr.rel (0) target = $region9
    $region8: #{tpu_custom_call.1} parent=1 // pred_region
      %s26 = ssub.s32 1280, 1280
      %27 = vsyncadd [#allocation6], %s26
      %s28 = sshll.u32 [#allocation5], 4
      %s29 = int_to_ptr.vmem [resolvable:$true] %s28
      %34 = dma.hbm_to_vmem [thread:$0]  %s1, 1280, %s29, [#allocation6], 128, 128, 8
    $region9: #{tpu_custom_call.1} parent=1 // pred_fallthru
      _
    // Predicated region
    $region10: #{tpu_custom_call.1} parent=1 // pred_check
      _
    $region11: #{tpu_custom_call.1} parent=1 // pred_check_branch
      %36 = sbr.rel (0) target = $region13
    $region12: #{tpu_custom_call.1} parent=1 // pred_region
      %s38 = ssub.s32 1664, 1664
      %39 = vsyncadd [#allocation6], %s38
      %s40 = sshll.u32 [#allocation7], 4
      %s41 = int_to_ptr.vmem [resolvable:$true] %s40
      %46 = dma.hbm_to_vmem [thread:$0]  %s2, 1664, %s41, [#allocation6], 128, 128, 8
    $region13: #{tpu_custom_call.1} parent=1 // pred_fallthru
      _
    // Predicated region
    $region14: #{tpu_custom_call.1} parent=1 // pred_check
      _
    $region15: #{tpu_custom_call.1} parent=1 // pred_check_branch
      %48 = sbr.rel (0) target = $region17
    $region16: #{tpu_custom_call.1} parent=1 // pred_region
      %49 = dma.done [#allocation3], 8448
    $region17: #{tpu_custom_call.1} parent=1 // pred_fallthru
      _
    // Predicated region
    $region18: #{tpu_custom_call.1} parent=1 // pred_check
      _
    $region19: #{tpu_custom_call.1} parent=1 // pred_check_branch
      %51 = sbr.rel (0) target = $region21
    $region20: #{tpu_custom_call.1} parent=1 // pred_region
      %52 = dma.done [#allocation6], 1280
    $region21: #{tpu_custom_call.1} parent=1 // pred_fallthru
      _
    // Predicated region
    $region22: #{tpu_custom_call.1} parent=1 // pred_check
      _
    $region23: #{tpu_custom_call.1} parent=1 // pred_check_branch
      %54 = sbr.rel (0) target = $region25
    $region24: #{tpu_custom_call.1} parent=1 // pred_region
      %55 = dma.done [#allocation6], 1664
    $region25: #{tpu_custom_call.1} parent=1 // pred_fallthru
      _
    %v56 = vlaneseq
    %v57 = vand.u32 %v56, 127
    %v58 = vadd.s32 %v57, 128
    %vm59 = vcmp.ge.s32.totalorder %v57, 128
    %vm60 = vcmp.ge.s32.totalorder %v58, 128
    %vm61 = vcmp.lt.s32.totalorder %v57, 192
    %vm62 = vcmp.lt.s32.totalorder %v58, 192
    %vm63 = vmand %vm59, %vm61
    %vm64 = vmand %vm60, %vm62
    %v65 = vsel %vm63, 2.0, 1.0
    %v66 = vsel %vm64, 2.0, 1.0
    %v67 = vsel %vm63, -1.0, 0.0
    %v68 = vsel %vm64, -1.0, 0.0
    %v69 = vld [vmem:[#allocation2 + $0x100] sm:$0xff]
    %v70 = vld [vmem:[#allocation2 + $0x108] sm:$0xff]
    %v71 = vld [vmem:[#allocation2 + $0x110] sm:$0xff]
    %v72 = vld [vmem:[#allocation2 + $0x118] sm:$0xff]
    %v73 = vld [vmem:[#allocation2 + $0x120] sm:$0xff]
    %v74 = vld [vmem:[#allocation2 + $0x128] sm:$0xff]
    %v75 = vld [vmem:[#allocation2 + $0x130] sm:$0xff]
    %v76 = vld [vmem:[#allocation2 + $0x138] sm:$0xff]
    %v77 = vld [vmem:[#allocation2 + $0x140] sm:$0xff]
    %v78 = vld [vmem:[#allocation2 + $0x148] sm:$0xff]
    %v79 = vld [vmem:[#allocation2 + $0x150] sm:$0xff]
    %v80 = vld [vmem:[#allocation2 + $0x158] sm:$0xff]
    %v81 = vld [vmem:[#allocation2 + $0x160] sm:$0xff]
    %v82 = vld [vmem:[#allocation2 + $0x168] sm:$0xff]
    %v83 = vld [vmem:[#allocation2 + $0x170] sm:$0xff]
    %v84 = vld [vmem:[#allocation2 + $0x178] sm:$0xff]
    %v85 = vld [vmem:[#allocation2 + $0x180] sm:$0xff]
    %v86 = vld [vmem:[#allocation2 + $0x188] sm:$0xff]
    %v87 = vld [vmem:[#allocation2 + $0x190] sm:$0xff]
    %v88 = vld [vmem:[#allocation2 + $0x198] sm:$0xff]
    %v89 = vld [vmem:[#allocation2 + $0x1a0] sm:$0xff]
    %v90 = vld [vmem:[#allocation2 + $0x1a8] sm:$0xff]
    %v91 = vld [vmem:[#allocation2 + $0x1b0] sm:$0xff]
    %v92 = vld [vmem:[#allocation2 + $0x1b8] sm:$0xff]
    %v93 = vld [vmem:[#allocation2 + $0x1c0] sm:$0xff]
    %v94 = vld [vmem:[#allocation2 + $0x1c8] sm:$0xff]
    %v95 = vld [vmem:[#allocation2 + $0x1d0] sm:$0xff]
    %v96 = vld [vmem:[#allocation2 + $0x1d8] sm:$0xff]
    %v97 = vld [vmem:[#allocation2 + $0x1e0] sm:$0xff]
    %v98 = vld [vmem:[#allocation2 + $0x1e8] sm:$0xff]
    %v99 = vld [vmem:[#allocation2 + $0x1f0] sm:$0xff]
    %v100 = vld [vmem:[#allocation2 + $0x1f8] sm:$0xff]
    %v101 = vld [vmem:[#allocation2 + $0x200] sm:$0xff]
    %v102 = vld [vmem:[#allocation2 + $0x208] sm:$0xff]
    %v103 = vld [vmem:[#allocation2 + $0x80] sm:$0xff]
    %v104 = vld [vmem:[#allocation2 + $0x88] sm:$0xff]
    %v105 = vld [vmem:[#allocation2 + $0x90] sm:$0xff]
    %v106 = vld [vmem:[#allocation2 + $0x98] sm:$0xff]
    %v107 = vld [vmem:[#allocation2 + $0xa0] sm:$0xff]
    %v108 = vld [vmem:[#allocation2 + $0xa8] sm:$0xff]
    %v109 = vld [vmem:[#allocation2 + $0xb0] sm:$0xff]
    %v110 = vld [vmem:[#allocation2 + $0xb8] sm:$0xff]
    %v111 = vld [vmem:[#allocation2 + $0xc0] sm:$0xff]
    %v112 = vld [vmem:[#allocation2 + $0xc8] sm:$0xff]
    %v113 = vld [vmem:[#allocation2 + $0xd0] sm:$0xff]
    %v114 = vld [vmem:[#allocation2 + $0xd8] sm:$0xff]
    %v115 = vld [vmem:[#allocation2 + $0xe0] sm:$0xff]
    %v116 = vld [vmem:[#allocation2 + $0xe8] sm:$0xff]
    %v117 = vld [vmem:[#allocation2 + $0xf0] sm:$0xff]
    %v118 = vld [vmem:[#allocation2 + $0xf8] sm:$0xff]
    %v119 = vld [vmem:[#allocation2] sm:$0xff]
    %v120 = vld [vmem:[#allocation2 + $0x8] sm:$0xff]
    %v121 = vxor.u32 %v119, 2147483648
    %v122 = vxor.u32 %v120, 2147483648
    %v123 = vmul.f32 %v121, 1.442695
    %v124 = vpow.pop %v123
    %v125 = vmul.f32 %v122, 1.442695
    %v126 = vpow.pop %v125
    %v127 = vadd.f32 %v124, 1.0
    %v128 = vadd.f32 %v126, 1.0
    %v129 = vrcp.pop %v127
    %v130 = vmul.f32 1.0, %v129
    %v131 = vrcp.pop %v128
    %v132 = vmul.f32 1.0, %v131
    %v133 = vmul.f32 %v130, %v65
    %v134 = vmul.f32 %v132, %v66
    %v135 = vadd.f32 %v133, %v67
    %v136 = vadd.f32 %v134, %v68
    %v137 = vmul.f32 %v135, %v136
    %v138 = vtanh.pop %v137
    %140 = vrot.lane.b32.xlu0 %v138, 64
    %v141 = vpop.permute.xlu0 %140
    %v143 = vmul.f32 %v136, %v141
    %145 = vrot.lane.b32.xlu0 %v143, 64
    %v146 = vpop.permute.xlu0 %145
    %vm147 = vcmask 523264
    %v148 = vsel %vm147, %v146, 0
    %150 = vmatprep.subr.mxu0 %v70
    %151 = vmatpush1.msra.mxu0 %v69
    %152 = vmatprep.subr.mxu0 %v72
    %153 = vmatpush1.msra.mxu0 %v71
    %154 = vmatprep.subr.mxu0 %v74
    %155 = vmatpush1.msra.mxu0 %v73
    %156 = vmatprep.subr.mxu0 %v76
    %157 = vmatpush1.msra.mxu0 %v75
    %158 = vmatprep.subr.mxu0 %v78
    %159 = vmatpush1.msra.mxu0 %v77
    %160 = vmatprep.subr.mxu0 %v80
    %161 = vmatpush1.msra.mxu0 %v79
    %162 = vmatprep.subr.mxu0 %v82
    %163 = vmatpush1.msra.mxu0 %v81
    %164 = vmatprep.subr.mxu0 %v84
    %165 = vmatpush1.msra.mxu0 %v83
    %166 = vmatprep.subr.mxu0 0.0
    %167 = vmatpush1.msra.mxu0 0.0
    %168 = vmatprep.subr.mxu0 0.0
    %169 = vmatpush1.msra.mxu0 0.0
    %170 = vmatprep.subr.mxu0 0.0
    %171 = vmatpush1.msra.mxu0 0.0
    %172 = vmatprep.subr.mxu0 0.0
    %173 = vmatpush1.msra.mxu0 0.0
    %174 = vmatprep.subr.mxu0 0.0
    %175 = vmatpush1.msra.mxu0 0.0
    %176 = vmatprep.subr.mxu0 0.0
    %177 = vmatpush1.msra.mxu0 0.0
    %178 = vmatprep.subr.mxu0 0.0
    %179 = vmatpush1.msra.mxu0 0.0
    %180 = vmatprep.subr.mxu0 0.0
    %181 = vmatpush1.msra.mxu0 0.0
    %182 = vmatprep.subr.mxu0 0.0
    %183 = vmatpush1.msra.mxu0 0.0
    %184 = vmatprep.subr.mxu0 0.0
    %185 = vmatpush1.msra.mxu0 0.0
    %186 = vmatprep.subr.mxu0 0.0
    %187 = vmatpush1.msra.mxu0 0.0
    %188 = vmatprep.subr.mxu0 0.0
    %189 = vmatpush1.msra.mxu0 0.0
    %190 = vmatprep.subr.mxu0 0.0
    %191 = vmatpush1.msra.mxu0 0.0
    %192 = vmatprep.subr.mxu0 0.0
    %193 = vmatpush1.msra.mxu0 0.0
    %194 = vmatprep.subr.mxu0 0.0
    %195 = vmatpush1.msra.mxu0 0.0
    %196 = vmatprep.subr.mxu0 0.0
    %197 = vmatpush1.msra.mxu0 0.0
    %198 = vmatprep.subr.mxu0 0.0
    %199 = vmatpush1.msra.mxu0 0.0
    %200 = vmatprep.subr.mxu0 0.0
    %201 = vmatpush1.msra.mxu0 0.0
    %202 = vmatprep.subr.mxu0 0.0
    %203 = vmatpush1.msra.mxu0 0.0
    %204 = vmatprep.subr.mxu0 0.0
    %205 = vmatpush1.msra.mxu0 0.0
    %206 = vmatprep.subr.mxu0 0.0
    %207 = vmatpush1.msra.mxu0 0.0
    %208 = vmatprep.subr.mxu0 0.0
    %209 = vmatpush1.msra.mxu0 0.0
    %210 = vmatprep.subr.mxu0 0.0
    %211 = vmatpush1.msra.mxu0 0.0
    %212 = vmatprep.subr.mxu0 0.0
    %213 = vmatpush1.msra.mxu0 0.0
    %214 = vmatprep.mubr.f32.mxu0 0.0
    %215 = vmatmul.mubr.f32.gmra.mrb[0].mxu0 %v148
    %v216 = vpop.f32.mrb[0].mxu0
    %v217 = vadd.f32 %v101, %v216
    %v218 = vpop.f32.mrb[0].mxu0
    %v219 = vadd.f32 %v102, %v218
    %220 = vdwg.mxu0
    %v221 = vxor.u32 %v217, 2147483648
    %v222 = vxor.u32 %v219, 2147483648
    %v223 = vmul.f32 %v221, 1.442695
    %v224 = vpow.pop %v223
    %v225 = vmul.f32 %v222, 1.442695
    %v226 = vpow.pop %v225
    %v227 = vadd.f32 %v224, 1.0
    %v228 = vadd.f32 %v226, 1.0
    %v229 = vrcp.pop %v227
    %v230 = vmul.f32 1.0, %v229
    %v231 = vrcp.pop %v228
    %v232 = vmul.f32 1.0, %v231
    %v233 = vmul.f32 %v230, %v65
    %v234 = vmul.f32 %v232, %v66
    %v235 = vadd.f32 %v233, %v67
    %v236 = vadd.f32 %v234, %v68
    %v237 = vmul.f32 %v235, %v236
    %v238 = vtanh.pop %v237
    %240 = vrot.lane.b32.xlu0 %v238, 64
    %v241 = vpop.permute.xlu0 %240
    %v243 = vmul.f32 %v236, %v241
    %v244 = vld [vmem:[#allocation2 + $0x10] sm:$0xff]
    %v245 = vld [vmem:[#allocation2 + $0x18] sm:$0xff]
    %246 = vmatprep.subr.mxu0 %v104
    %247 = vmatpush1.msra.mxu0 %v103
    %248 = vmatprep.subr.mxu0 %v106
    %249 = vmatpush1.msra.mxu0 %v105
    %250 = vmatprep.subr.mxu0 %v108
    %251 = vmatpush1.msra.mxu0 %v107
    %252 = vmatprep.subr.mxu0 %v110
    %253 = vmatpush1.msra.mxu0 %v109
    %254 = vmatprep.subr.mxu0 %v112
    %255 = vmatpush1.msra.mxu0 %v111
    %256 = vmatprep.subr.mxu0 %v114
    %257 = vmatpush1.msra.mxu0 %v113
    %258 = vmatprep.subr.mxu0 %v116
    %259 = vmatpush1.msra.mxu0 %v115
    %260 = vmatprep.subr.mxu0 %v118
    %261 = vmatpush1.msra.mxu0 %v117
    %262 = vmatprep.subr.mxu0 0.0
    %263 = vmatpush1.msra.mxu0 0.0
    %264 = vmatprep.subr.mxu0 0.0
    %265 = vmatpush1.msra.mxu0 0.0
    %266 = vmatprep.subr.mxu0 0.0
    %267 = vmatpush1.msra.mxu0 0.0
    %268 = vmatprep.subr.mxu0 0.0
    %269 = vmatpush1.msra.mxu0 0.0
    %270 = vmatprep.subr.mxu0 0.0
    %271 = vmatpush1.msra.mxu0 0.0
    %272 = vmatprep.subr.mxu0 0.0
    %273 = vmatpush1.msra.mxu0 0.0
    %274 = vmatprep.subr.mxu0 0.0
    %275 = vmatpush1.msra.mxu0 0.0
    %276 = vmatprep.subr.mxu0 0.0
    %277 = vmatpush1.msra.mxu0 0.0
    %278 = vmatprep.subr.mxu0 0.0
    %279 = vmatpush1.msra.mxu0 0.0
    %280 = vmatprep.subr.mxu0 0.0
    %281 = vmatpush1.msra.mxu0 0.0
    %282 = vmatprep.subr.mxu0 0.0
    %283 = vmatpush1.msra.mxu0 0.0
    %284 = vmatprep.subr.mxu0 0.0
    %285 = vmatpush1.msra.mxu0 0.0
    %286 = vmatprep.subr.mxu0 0.0
    %287 = vmatpush1.msra.mxu0 0.0
    %288 = vmatprep.subr.mxu0 0.0
    %289 = vmatpush1.msra.mxu0 0.0
    %290 = vmatprep.subr.mxu0 0.0
    %291 = vmatpush1.msra.mxu0 0.0
    %292 = vmatprep.subr.mxu0 0.0
    %293 = vmatpush1.msra.mxu0 0.0
    %294 = vmatprep.subr.mxu0 0.0
    %295 = vmatpush1.msra.mxu0 0.0
    %296 = vmatprep.subr.mxu0 0.0
    %297 = vmatpush1.msra.mxu0 0.0
    %298 = vmatprep.subr.mxu0 0.0
    %299 = vmatpush1.msra.mxu0 0.0
    %300 = vmatprep.subr.mxu0 0.0
    %301 = vmatpush1.msra.mxu0 0.0
    %302 = vmatprep.subr.mxu0 0.0
    %303 = vmatpush1.msra.mxu0 0.0
    %304 = vmatprep.subr.mxu0 0.0
    %305 = vmatpush1.msra.mxu0 0.0
    %306 = vmatprep.subr.mxu0 0.0
    %307 = vmatpush1.msra.mxu0 0.0
    %308 = vmatprep.subr.mxu0 0.0
    %309 = vmatpush1.msra.mxu0 0.0
    %310 = vmatprep.mubr.f32.mxu0 0.0
    %311 = vmatmul.mubr.f32.gmra.mrb[0].mxu0 %v148
    %v312 = vpop.f32.mrb[0].mxu0
    %v313 = vadd.f32 0.0, %v312
    %v314 = vpop.f32.mrb[0].mxu0
    %v315 = vadd.f32 0.0, %v314
    %316 = vdwg.mxu0
    %v317 = vadd.f32 %v244, %v313
    %v318 = vadd.f32 %v245, %v315
    %v319 = vxor.u32 %v317, 2147483648
    %v320 = vxor.u32 %v318, 2147483648
    %v321 = vmul.f32 %v319, 1.442695
    %v322 = vpow.pop %v321
    %v323 = vmul.f32 %v320, 1.442695
    %v324 = vpow.pop %v323
    %v325 = vadd.f32 %v322, 1.0
    %v326 = vadd.f32 %v324, 1.0
    %v327 = vrcp.pop %v325
    %v328 = vmul.f32 1.0, %v327
    %v329 = vrcp.pop %v326
    %v330 = vmul.f32 1.0, %v329
    %v331 = vmul.f32 %v328, %v65
    %v332 = vmul.f32 %v330, %v66
    %v333 = vadd.f32 %v331, %v67
    %v334 = vadd.f32 %v332, %v68
    %336 = vrot.lane.b32.xlu0 %v137, 64
    %v337 = vpop.permute.xlu0 %336
    %v339 = vmul.f32 %v333, %v337
    %v340 = vmul.f32 %v333, %v334
    %342 = vrot.lane.b32.xlu0 %v340, 64
    %v343 = vpop.permute.xlu0 %342
    %v345 = vadd.f32 %v339, %v343
    %v346 = vtanh.pop %v345
    %v347 = vmul.f32 %v334, %v346
    %349 = vrot.lane.b32.xlu0 %v347, 64
    %v350 = vpop.permute.xlu0 %349
    %v352 = vsel %vm147, %v350, %v243
    %353 = vmatprep.subr.mxu0 %v70
    %354 = vmatpush1.msra.mxu0 %v69
    %355 = vmatprep.subr.mxu0 %v72
    %356 = vmatpush1.msra.mxu0 %v71
    %357 = vmatprep.subr.mxu0 %v74
    %358 = vmatpush1.msra.mxu0 %v73
    %359 = vmatprep.subr.mxu0 %v76
    %360 = vmatpush1.msra.mxu0 %v75
    %361 = vmatprep.subr.mxu0 %v78
    %362 = vmatpush1.msra.mxu0 %v77
    %363 = vmatprep.subr.mxu0 %v80
    %364 = vmatpush1.msra.mxu0 %v79
    %365 = vmatprep.subr.mxu0 %v82
    %366 = vmatpush1.msra.mxu0 %v81
    %367 = vmatprep.subr.mxu0 %v84
    %368 = vmatpush1.msra.mxu0 %v83
    %369 = vmatprep.subr.mxu0 %v86
    %370 = vmatpush1.msra.mxu0 %v85
    %371 = vmatprep.subr.mxu0 %v88
    %372 = vmatpush1.msra.mxu0 %v87
    %373 = vmatprep.subr.mxu0 %v90
    %374 = vmatpush1.msra.mxu0 %v89
    %375 = vmatprep.subr.mxu0 %v92
    %376 = vmatpush1.msra.mxu0 %v91
    %377 = vmatprep.subr.mxu0 %v94
    %378 = vmatpush1.msra.mxu0 %v93
    %379 = vmatprep.subr.mxu0 %v96
    %380 = vmatpush1.msra.mxu0 %v95
    %381 = vmatprep.subr.mxu0 %v98
    %382 = vmatpush1.msra.mxu0 %v97
    %383 = vmatprep.subr.mxu0 %v100
    %384 = vmatpush1.msra.mxu0 %v99
    %385 = vmatprep.subr.mxu0 0.0
    %386 = vmatpush1.msra.mxu0 0.0
    %387 = vmatprep.subr.mxu0 0.0
    %388 = vmatpush1.msra.mxu0 0.0
    %389 = vmatprep.subr.mxu0 0.0
    %390 = vmatpush1.msra.mxu0 0.0
    %391 = vmatprep.subr.mxu0 0.0
    %392 = vmatpush1.msra.mxu0 0.0
    %393 = vmatprep.subr.mxu0 0.0
    %394 = vmatpush1.msra.mxu0 0.0
    %395 = vmatprep.subr.mxu0 0.0
    %396 = vmatpush1.msra.mxu0 0.0
    %397 = vmatprep.subr.mxu0 0.0
    %398 = vmatpush1.msra.mxu0 0.0
    %399 = vmatprep.subr.mxu0 0.0
    %400 = vmatpush1.msra.mxu0 0.0
    %401 = vmatprep.subr.mxu0 0.0
    %402 = vmatpush1.msra.mxu0 0.0
    %403 = vmatprep.subr.mxu0 0.0
    %404 = vmatpush1.msra.mxu0 0.0
    %405 = vmatprep.subr.mxu0 0.0
    %406 = vmatpush1.msra.mxu0 0.0
    %407 = vmatprep.subr.mxu0 0.0
    %408 = vmatpush1.msra.mxu0 0.0
    %409 = vmatprep.subr.mxu0 0.0
    %410 = vmatpush1.msra.mxu0 0.0
    %411 = vmatprep.subr.mxu0 0.0
    %412 = vmatpush1.msra.mxu0 0.0
    %413 = vmatprep.subr.mxu0 0.0
    %414 = vmatpush1.msra.mxu0 0.0
    %415 = vmatprep.subr.mxu0 0.0
    %416 = vmatpush1.msra.mxu0 0.0
    %417 = vmatprep.mubr.f32.mxu0 0.0
    %418 = vmatmul.mubr.f32.gmra.mrb[0].mxu0 %v352
    %v419 = vpop.f32.mrb[0].mxu0
    %v420 = vadd.f32 %v101, %v419
    %v421 = vpop.f32.mrb[0].mxu0
    %v422 = vadd.f32 %v102, %v421
    %423 = vdwg.mxu0
    %v424 = vxor.u32 %v420, 2147483648
    %v425 = vxor.u32 %v422, 2147483648
    %v426 = vmul.f32 %v424, 1.442695
    %v427 = vpow.pop %v426
    %v428 = vmul.f32 %v425, 1.442695
    %v429 = vpow.pop %v428
    %v430 = vadd.f32 %v427, 1.0
    %v431 = vadd.f32 %v429, 1.0
    %v432 = vrcp.pop %v430
    %v433 = vmul.f32 1.0, %v432
    %v434 = vrcp.pop %v431
    %v435 = vmul.f32 1.0, %v434
    %v436 = vmul.f32 %v433, %v65
    %v437 = vmul.f32 %v435, %v66
    %v438 = vadd.f32 %v436, %v67
    %v439 = vadd.f32 %v437, %v68
    %441 = vrot.lane.b32.xlu0 %v237, 64
    %v442 = vpop.permute.xlu0 %441
    %v444 = vmul.f32 %v438, %v442
    %v445 = vmul.f32 %v438, %v439
    %447 = vrot.lane.b32.xlu0 %v445, 64
    %v448 = vpop.permute.xlu0 %447
    %v450 = vadd.f32 %v444, %v448
    %v451 = vtanh.pop %v450
    %v452 = vmul.f32 %v439, %v451
    %v453 = vld [vmem:[#allocation2 + $0x20] sm:$0xff]
    %v454 = vld [vmem:[#allocation2 + $0x28] sm:$0xff]
    %v455 = vsel %vm147, %v350, 0
    %457 = vmatprep.subr.mxu0 %v104
    %458 = vmatpush1.msra.mxu0 %v103
    %459 = vmatprep.subr.mxu0 %v106
    %460 = vmatpush1.msra.mxu0 %v105
    %461 = vmatprep.subr.mxu0 %v108
    %462 = vmatpush1.msra.mxu0 %v107
    %463 = vmatprep.subr.mxu0 %v110
    %464 = vmatpush1.msra.mxu0 %v109
    %465 = vmatprep.subr.mxu0 %v112
    %466 = vmatpush1.msra.mxu0 %v111
    %467 = vmatprep.subr.mxu0 %v114
    %468 = vmatpush1.msra.mxu0 %v113
    %469 = vmatprep.subr.mxu0 %v116
    %470 = vmatpush1.msra.mxu0 %v115
    %471 = vmatprep.subr.mxu0 %v118
    %472 = vmatpush1.msra.mxu0 %v117
    %473 = vmatprep.subr.mxu0 0.0
    %474 = vmatpush1.msra.mxu0 0.0
    %475 = vmatprep.subr.mxu0 0.0
    %476 = vmatpush1.msra.mxu0 0.0
    %477 = vmatprep.subr.mxu0 0.0
    %478 = vmatpush1.msra.mxu0 0.0
    %479 = vmatprep.subr.mxu0 0.0
    %480 = vmatpush1.msra.mxu0 0.0
    %481 = vmatprep.subr.mxu0 0.0
    %482 = vmatpush1.msra.mxu0 0.0
    %483 = vmatprep.subr.mxu0 0.0
    %484 = vmatpush1.msra.mxu0 0.0
    %485 = vmatprep.subr.mxu0 0.0
    %486 = vmatpush1.msra.mxu0 0.0
    %487 = vmatprep.subr.mxu0 0.0
    %488 = vmatpush1.msra.mxu0 0.0
    %489 = vmatprep.subr.mxu0 0.0
    %490 = vmatpush1.msra.mxu0 0.0
    %491 = vmatprep.subr.mxu0 0.0
    %492 = vmatpush1.msra.mxu0 0.0
    %493 = vmatprep.subr.mxu0 0.0
    %494 = vmatpush1.msra.mxu0 0.0
    %495 = vmatprep.subr.mxu0 0.0
    %496 = vmatpush1.msra.mxu0 0.0
    %497 = vmatprep.subr.mxu0 0.0
    %498 = vmatpush1.msra.mxu0 0.0
    %499 = vmatprep.subr.mxu0 0.0
    %500 = vmatpush1.msra.mxu0 0.0
    %501 = vmatprep.subr.mxu0 0.0
    %502 = vmatpush1.msra.mxu0 0.0
    %503 = vmatprep.subr.mxu0 0.0
    %504 = vmatpush1.msra.mxu0 0.0
    %505 = vmatprep.subr.mxu0 0.0
    %506 = vmatpush1.msra.mxu0 0.0
    %507 = vmatprep.subr.mxu0 0.0
    %508 = vmatpush1.msra.mxu0 0.0
    %509 = vmatprep.subr.mxu0 0.0
    %510 = vmatpush1.msra.mxu0 0.0
    %511 = vmatprep.subr.mxu0 0.0
    %512 = vmatpush1.msra.mxu0 0.0
    %513 = vmatprep.subr.mxu0 0.0
    %514 = vmatpush1.msra.mxu0 0.0
    %515 = vmatprep.subr.mxu0 0.0
    %516 = vmatpush1.msra.mxu0 0.0
    %517 = vmatprep.subr.mxu0 0.0
    %518 = vmatpush1.msra.mxu0 0.0
    %519 = vmatprep.subr.mxu0 0.0
    %520 = vmatpush1.msra.mxu0 0.0
    %521 = vmatprep.mubr.f32.mxu0 0.0
    %522 = vmatmul.mubr.f32.gmra.mrb[0].mxu0 %v455
    %v523 = vpop.f32.mrb[0].mxu0
    %v524 = vadd.f32 0.0, %v523
    %v525 = vpop.f32.mrb[0].mxu0
    %v526 = vadd.f32 0.0, %v525
    %527 = vdwg.mxu0
    %v528 = vadd.f32 %v453, %v524
    %v529 = vadd.f32 %v454, %v526
    %v530 = vxor.u32 %v528, 2147483648
    %v531 = vxor.u32 %v529, 2147483648
    %v532 = vmul.f32 %v530, 1.442695
    %v533 = vpow.pop %v532
    %v534 = vmul.f32 %v531, 1.442695
    %v535 = vpow.pop %v534
    %v536 = vadd.f32 %v533, 1.0
    %v537 = vadd.f32 %v535, 1.0
    %v538 = vrcp.pop %v536
    %v539 = vmul.f32 1.0, %v538
    %v540 = vrcp.pop %v537
    %v541 = vmul.f32 1.0, %v540
    %v542 = vmul.f32 %v539, %v65
    %v543 = vmul.f32 %v541, %v66
    %v544 = vadd.f32 %v542, %v67
    %v545 = vadd.f32 %v543, %v68
    %v546 = vmul.f32 %v544, %v345
    %v547 = vmul.f32 %v544, %v545
    %549 = vrot.lane.b32.xlu0 %v547, 64
    %v550 = vpop.permute.xlu0 %549
    %v552 = vadd.f32 %v546, %v550
    %v553 = vtanh.pop %v552
    %v554 = vmul.f32 %v545, %v553
    %556 = vrot.lane.b32.xlu0 %v554, 64
    %v557 = vpop.permute.xlu0 %556
    %v559 = vsel %vm147, %v557, %v452
    %560 = vmatprep.subr.mxu0 %v70
    %561 = vmatpush1.msra.mxu0 %v69
    %562 = vmatprep.subr.mxu0 %v72
    %563 = vmatpush1.msra.mxu0 %v71
    %564 = vmatprep.subr.mxu0 %v74
    %565 = vmatpush1.msra.mxu0 %v73
    %566 = vmatprep.subr.mxu0 %v76
    %567 = vmatpush1.msra.mxu0 %v75
    %568 = vmatprep.subr.mxu0 %v78
    %569 = vmatpush1.msra.mxu0 %v77
    %570 = vmatprep.subr.mxu0 %v80
    %571 = vmatpush1.msra.mxu0 %v79
    %572 = vmatprep.subr.mxu0 %v82
    %573 = vmatpush1.msra.mxu0 %v81
    %574 = vmatprep.subr.mxu0 %v84
    %575 = vmatpush1.msra.mxu0 %v83
    %576 = vmatprep.subr.mxu0 %v86
    %577 = vmatpush1.msra.mxu0 %v85
    %578 = vmatprep.subr.mxu0 %v88
    %579 = vmatpush1.msra.mxu0 %v87
    %580 = vmatprep.subr.mxu0 %v90
    %581 = vmatpush1.msra.mxu0 %v89
    %582 = vmatprep.subr.mxu0 %v92
    %583 = vmatpush1.msra.mxu0 %v91
    %584 = vmatprep.subr.mxu0 %v94
    %585 = vmatpush1.msra.mxu0 %v93
    %586 = vmatprep.subr.mxu0 %v96
    %587 = vmatpush1.msra.mxu0 %v95
    %588 = vmatprep.subr.mxu0 %v98
    %589 = vmatpush1.msra.mxu0 %v97
    %590 = vmatprep.subr.mxu0 %v100
    %591 = vmatpush1.msra.mxu0 %v99
    %592 = vmatprep.subr.mxu0 0.0
    %593 = vmatpush1.msra.mxu0 0.0
    %594 = vmatprep.subr.mxu0 0.0
    %595 = vmatpush1.msra.mxu0 0.0
    %596 = vmatprep.subr.mxu0 0.0
    %597 = vmatpush1.msra.mxu0 0.0
    %598 = vmatprep.subr.mxu0 0.0
    %599 = vmatpush1.msra.mxu0 0.0
    %600 = vmatprep.subr.mxu0 0.0
    %601 = vmatpush1.msra.mxu0 0.0
    %602 = vmatprep.subr.mxu0 0.0
    %603 = vmatpush1.msra.mxu0 0.0
    %604 = vmatprep.subr.mxu0 0.0
    %605 = vmatpush1.msra.mxu0 0.0
    %606 = vmatprep.subr.mxu0 0.0
    %607 = vmatpush1.msra.mxu0 0.0
    %608 = vmatprep.subr.mxu0 0.0
    %609 = vmatpush1.msra.mxu0 0.0
    %610 = vmatprep.subr.mxu0 0.0
    %611 = vmatpush1.msra.mxu0 0.0
    %612 = vmatprep.subr.mxu0 0.0
    %613 = vmatpush1.msra.mxu0 0.0
    %614 = vmatprep.subr.mxu0 0.0
    %615 = vmatpush1.msra.mxu0 0.0
    %616 = vmatprep.subr.mxu0 0.0
    %617 = vmatpush1.msra.mxu0 0.0
    %618 = vmatprep.subr.mxu0 0.0
    %619 = vmatpush1.msra.mxu0 0.0
    %620 = vmatprep.subr.mxu0 0.0
    %621 = vmatpush1.msra.mxu0 0.0
    %622 = vmatprep.subr.mxu0 0.0
    %623 = vmatpush1.msra.mxu0 0.0
    %624 = vmatprep.mubr.f32.mxu0 0.0
    %625 = vmatmul.mubr.f32.gmra.mrb[0].mxu0 %v559
    %v626 = vpop.f32.mrb[0].mxu0
    %v627 = vadd.f32 %v101, %v626
    %v628 = vpop.f32.mrb[0].mxu0
    %v629 = vadd.f32 %v102, %v628
    %630 = vdwg.mxu0
    %v631 = vxor.u32 %v627, 2147483648
    %v632 = vxor.u32 %v629, 2147483648
    %v633 = vmul.f32 %v631, 1.442695
    %v634 = vpow.pop %v633
    %v635 = vmul.f32 %v632, 1.442695
    %v636 = vpow.pop %v635
    %v637 = vadd.f32 %v634, 1.0
    %v638 = vadd.f32 %v636, 1.0
    %v639 = vrcp.pop %v637
    %v640 = vmul.f32 1.0, %v639
    %v641 = vrcp.pop %v638
    %v642 = vmul.f32 1.0, %v641
    %v643 = vmul.f32 %v640, %v65
    %v644 = vmul.f32 %v642, %v66
    %v645 = vadd.f32 %v643, %v67
    %v646 = vadd.f32 %v644, %v68
    %v647 = vmul.f32 %v645, %v450
    %v648 = vmul.f32 %v645, %v646
    %650 = vrot.lane.b32.xlu0 %v648, 64
    %v651 = vpop.permute.xlu0 %650
    %v653 = vadd.f32 %v647, %v651
    %v654 = vtanh.pop %v653
    %v655 = vmul.f32 %v646, %v654
    %v656 = vld [vmem:[#allocation2 + $0x30] sm:$0xff]
    %v657 = vld [vmem:[#allocation2 + $0x38] sm:$0xff]
    %v658 = vsel %vm147, %v557, 0
    %660 = vmatprep.subr.mxu0 %v104
    %661 = vmatpush1.msra.mxu0 %v103
    %662 = vmatprep.subr.mxu0 %v106
    %663 = vmatpush1.msra.mxu0 %v105
    %664 = vmatprep.subr.mxu0 %v108
    %665 = vmatpush1.msra.mxu0 %v107
    %666 = vmatprep.subr.mxu0 %v110
    %667 = vmatpush1.msra.mxu0 %v109
    %668 = vmatprep.subr.mxu0 %v112
    %669 = vmatpush1.msra.mxu0 %v111
    %670 = vmatprep.subr.mxu0 %v114
    %671 = vmatpush1.msra.mxu0 %v113
    %672 = vmatprep.subr.mxu0 %v116
    %673 = vmatpush1.msra.mxu0 %v115
    %674 = vmatprep.subr.mxu0 %v118
    %675 = vmatpush1.msra.mxu0 %v117
    %676 = vmatprep.subr.mxu0 0.0
    %677 = vmatpush1.msra.mxu0 0.0
    %678 = vmatprep.subr.mxu0 0.0
    %679 = vmatpush1.msra.mxu0 0.0
    %680 = vmatprep.subr.mxu0 0.0
    %681 = vmatpush1.msra.mxu0 0.0
    %682 = vmatprep.subr.mxu0 0.0
    %683 = vmatpush1.msra.mxu0 0.0
    %684 = vmatprep.subr.mxu0 0.0
    %685 = vmatpush1.msra.mxu0 0.0
    %686 = vmatprep.subr.mxu0 0.0
    %687 = vmatpush1.msra.mxu0 0.0
    %688 = vmatprep.subr.mxu0 0.0
    %689 = vmatpush1.msra.mxu0 0.0
    %690 = vmatprep.subr.mxu0 0.0
    %691 = vmatpush1.msra.mxu0 0.0
    %692 = vmatprep.subr.mxu0 0.0
    %693 = vmatpush1.msra.mxu0 0.0
    %694 = vmatprep.subr.mxu0 0.0
    %695 = vmatpush1.msra.mxu0 0.0
    %696 = vmatprep.subr.mxu0 0.0
    %697 = vmatpush1.msra.mxu0 0.0
    %698 = vmatprep.subr.mxu0 0.0
    %699 = vmatpush1.msra.mxu0 0.0
    %700 = vmatprep.subr.mxu0 0.0
    %701 = vmatpush1.msra.mxu0 0.0
    %702 = vmatprep.subr.mxu0 0.0
    %703 = vmatpush1.msra.mxu0 0.0
    %704 = vmatprep.subr.mxu0 0.0
    %705 = vmatpush1.msra.mxu0 0.0
    %706 = vmatprep.subr.mxu0 0.0
    %707 = vmatpush1.msra.mxu0 0.0
    %708 = vmatprep.subr.mxu0 0.0
    %709 = vmatpush1.msra.mxu0 0.0
    %710 = vmatprep.subr.mxu0 0.0
    %711 = vmatpush1.msra.mxu0 0.0
    %712 = vmatprep.subr.mxu0 0.0
    %713 = vmatpush1.msra.mxu0 0.0
    %714 = vmatprep.subr.mxu0 0.0
    %715 = vmatpush1.msra.mxu0 0.0
    %716 = vmatprep.subr.mxu0 0.0
    %717 = vmatpush1.msra.mxu0 0.0
    %718 = vmatprep.subr.mxu0 0.0
    %719 = vmatpush1.msra.mxu0 0.0
    %720 = vmatprep.subr.mxu0 0.0
    %721 = vmatpush1.msra.mxu0 0.0
    %722 = vmatprep.subr.mxu0 0.0
    %723 = vmatpush1.msra.mxu0 0.0
    %724 = vmatprep.mubr.f32.mxu0 0.0
    %725 = vmatmul.mubr.f32.gmra.mrb[0].mxu0 %v658
    %v726 = vpop.f32.mrb[0].mxu0
    %v727 = vadd.f32 0.0, %v726
    %v728 = vpop.f32.mrb[0].mxu0
    %v729 = vadd.f32 0.0, %v728
    %730 = vdwg.mxu0
    %v731 = vadd.f32 %v656, %v727
    %v732 = vadd.f32 %v657, %v729
    %v733 = vxor.u32 %v731, 2147483648
    %v734 = vxor.u32 %v732, 2147483648
    %v735 = vmul.f32 %v733, 1.442695
    %v736 = vpow.pop %v735
    %v737 = vmul.f32 %v734, 1.442695
    %v738 = vpow.pop %v737
    %v739 = vadd.f32 %v736, 1.0
    %v740 = vadd.f32 %v738, 1.0
    %v741 = vrcp.pop %v739
    %v742 = vmul.f32 1.0, %v741
    %v743 = vrcp.pop %v740
    %v744 = vmul.f32 1.0, %v743
    %v745 = vmul.f32 %v742, %v65
    %v746 = vmul.f32 %v744, %v66
    %v747 = vadd.f32 %v745, %v67
    %v748 = vadd.f32 %v746, %v68
    %v749 = vmul.f32 %v747, %v552
    %v750 = vmul.f32 %v747, %v748
    %752 = vrot.lane.b32.xlu0 %v750, 64
    %v753 = vpop.permute.xlu0 %752
    %v755 = vadd.f32 %v749, %v753
    %v756 = vtanh.pop %v755
    %v757 = vmul.f32 %v748, %v756
    %759 = vrot.lane.b32.xlu0 %v757, 64
    %v760 = vpop.permute.xlu0 %759
    %v762 = vsel %vm147, %v760, %v655
    %763 = vmatprep.subr.mxu0 %v70
    %764 = vmatpush1.msra.mxu0 %v69
    %765 = vmatprep.subr.mxu0 %v72
    %766 = vmatpush1.msra.mxu0 %v71
    %767 = vmatprep.subr.mxu0 %v74
    %768 = vmatpush1.msra.mxu0 %v73
    %769 = vmatprep.subr.mxu0 %v76
    %770 = vmatpush1.msra.mxu0 %v75
    %771 = vmatprep.subr.mxu0 %v78
    %772 = vmatpush1.msra.mxu0 %v77
    %773 = vmatprep.subr.mxu0 %v80
    %774 = vmatpush1.msra.mxu0 %v79
    %775 = vmatprep.subr.mxu0 %v82
    %776 = vmatpush1.msra.mxu0 %v81
    %777 = vmatprep.subr.mxu0 %v84
    %778 = vmatpush1.msra.mxu0 %v83
    %779 = vmatprep.subr.mxu0 %v86
    %780 = vmatpush1.msra.mxu0 %v85
    %781 = vmatprep.subr.mxu0 %v88
    %782 = vmatpush1.msra.mxu0 %v87
    %783 = vmatprep.subr.mxu0 %v90
    %784 = vmatpush1.msra.mxu0 %v89
    %785 = vmatprep.subr.mxu0 %v92
    %786 = vmatpush1.msra.mxu0 %v91
    %787 = vmatprep.subr.mxu0 %v94
    %788 = vmatpush1.msra.mxu0 %v93
    %789 = vmatprep.subr.mxu0 %v96
    %790 = vmatpush1.msra.mxu0 %v95
    %791 = vmatprep.subr.mxu0 %v98
    %792 = vmatpush1.msra.mxu0 %v97
    %793 = vmatprep.subr.mxu0 %v100
    %794 = vmatpush1.msra.mxu0 %v99
    %795 = vmatprep.subr.mxu0 0.0
    %796 = vmatpush1.msra.mxu0 0.0
    %797 = vmatprep.subr.mxu0 0.0
    %798 = vmatpush1.msra.mxu0 0.0
    %799 = vmatprep.subr.mxu0 0.0
    %800 = vmatpush1.msra.mxu0 0.0
    %801 = vmatprep.subr.mxu0 0.0
    %802 = vmatpush1.msra.mxu0 0.0
    %803 = vmatprep.subr.mxu0 0.0
    %804 = vmatpush1.msra.mxu0 0.0
    %805 = vmatprep.subr.mxu0 0.0
    %806 = vmatpush1.msra.mxu0 0.0
    %807 = vmatprep.subr.mxu0 0.0
    %808 = vmatpush1.msra.mxu0 0.0
    %809 = vmatprep.subr.mxu0 0.0
    %810 = vmatpush1.msra.mxu0 0.0
    %811 = vmatprep.subr.mxu0 0.0
    %812 = vmatpush1.msra.mxu0 0.0
    %813 = vmatprep.subr.mxu0 0.0
    %814 = vmatpush1.msra.mxu0 0.0
    %815 = vmatprep.subr.mxu0 0.0
    %816 = vmatpush1.msra.mxu0 0.0
    %817 = vmatprep.subr.mxu0 0.0
    %818 = vmatpush1.msra.mxu0 0.0
    %819 = vmatprep.subr.mxu0 0.0
    %820 = vmatpush1.msra.mxu0 0.0
    %821 = vmatprep.subr.mxu0 0.0
    %822 = vmatpush1.msra.mxu0 0.0
    %823 = vmatprep.subr.mxu0 0.0
    %824 = vmatpush1.msra.mxu0 0.0
    %825 = vmatprep.subr.mxu0 0.0
    %826 = vmatpush1.msra.mxu0 0.0
    %827 = vmatprep.mubr.f32.mxu0 0.0
    %828 = vmatmul.mubr.f32.gmra.mrb[0].mxu0 %v762
    %v829 = vpop.f32.mrb[0].mxu0
    %v830 = vadd.f32 %v101, %v829
    %v831 = vpop.f32.mrb[0].mxu0
    %v832 = vadd.f32 %v102, %v831
    %833 = vdwg.mxu0
    %v834 = vxor.u32 %v830, 2147483648
    %v835 = vxor.u32 %v832, 2147483648
    %v836 = vmul.f32 %v834, 1.442695
    %v837 = vpow.pop %v836
    %v838 = vmul.f32 %v835, 1.442695
    %v839 = vpow.pop %v838
    %v840 = vadd.f32 %v837, 1.0
    %v841 = vadd.f32 %v839, 1.0
    %v842 = vrcp.pop %v840
    %v843 = vmul.f32 1.0, %v842
    %v844 = vrcp.pop %v841
    %v845 = vmul.f32 1.0, %v844
    %v846 = vmul.f32 %v843, %v65
    %v847 = vmul.f32 %v845, %v66
    %v848 = vadd.f32 %v846, %v67
    %v849 = vadd.f32 %v847, %v68
    %v850 = vmul.f32 %v848, %v653
    %v851 = vmul.f32 %v848, %v849
    %853 = vrot.lane.b32.xlu0 %v851, 64
    %v854 = vpop.permute.xlu0 %853
    %v856 = vadd.f32 %v850, %v854
    %v857 = vtanh.pop %v856
    %v858 = vmul.f32 %v849, %v857
    %v859 = vld [vmem:[#allocation2 + $0x40] sm:$0xff]
    %v860 = vld [vmem:[#allocation2 + $0x48] sm:$0xff]
    %v861 = vsel %vm147, %v760, 0
    %863 = vmatprep.subr.mxu0 %v104
    %864 = vmatpush1.msra.mxu0 %v103
    %865 = vmatprep.subr.mxu0 %v106
    %866 = vmatpush1.msra.mxu0 %v105
    %867 = vmatprep.subr.mxu0 %v108
    %868 = vmatpush1.msra.mxu0 %v107
    %869 = vmatprep.subr.mxu0 %v110
    %870 = vmatpush1.msra.mxu0 %v109
    %871 = vmatprep.subr.mxu0 %v112
    %872 = vmatpush1.msra.mxu0 %v111
    %873 = vmatprep.subr.mxu0 %v114
    %874 = vmatpush1.msra.mxu0 %v113
    %875 = vmatprep.subr.mxu0 %v116
    %876 = vmatpush1.msra.mxu0 %v115
    %877 = vmatprep.subr.mxu0 %v118
    %878 = vmatpush1.msra.mxu0 %v117
    %879 = vmatprep.subr.mxu0 0.0
    %880 = vmatpush1.msra.mxu0 0.0
    %881 = vmatprep.subr.mxu0 0.0
    %882 = vmatpush1.msra.mxu0 0.0
    %883 = vmatprep.subr.mxu0 0.0
    %884 = vmatpush1.msra.mxu0 0.0
    %885 = vmatprep.subr.mxu0 0.0
    %886 = vmatpush1.msra.mxu0 0.0
    %887 = vmatprep.subr.mxu0 0.0
    %888 = vmatpush1.msra.mxu0 0.0
    %889 = vmatprep.subr.mxu0 0.0
    %890 = vmatpush1.msra.mxu0 0.0
    %891 = vmatprep.subr.mxu0 0.0
    %892 = vmatpush1.msra.mxu0 0.0
    %893 = vmatprep.subr.mxu0 0.0
    %894 = vmatpush1.msra.mxu0 0.0
    %895 = vmatprep.subr.mxu0 0.0
    %896 = vmatpush1.msra.mxu0 0.0
    %897 = vmatprep.subr.mxu0 0.0
    %898 = vmatpush1.msra.mxu0 0.0
    %899 = vmatprep.subr.mxu0 0.0
    %900 = vmatpush1.msra.mxu0 0.0
    %901 = vmatprep.subr.mxu0 0.0
    %902 = vmatpush1.msra.mxu0 0.0
    %903 = vmatprep.subr.mxu0 0.0
    %904 = vmatpush1.msra.mxu0 0.0
    %905 = vmatprep.subr.mxu0 0.0
    %906 = vmatpush1.msra.mxu0 0.0
    %907 = vmatprep.subr.mxu0 0.0
    %908 = vmatpush1.msra.mxu0 0.0
    %909 = vmatprep.subr.mxu0 0.0
    %910 = vmatpush1.msra.mxu0 0.0
    %911 = vmatprep.subr.mxu0 0.0
    %912 = vmatpush1.msra.mxu0 0.0
    %913 = vmatprep.subr.mxu0 0.0
    %914 = vmatpush1.msra.mxu0 0.0
    %915 = vmatprep.subr.mxu0 0.0
    %916 = vmatpush1.msra.mxu0 0.0
    %917 = vmatprep.subr.mxu0 0.0
    %918 = vmatpush1.msra.mxu0 0.0
    %919 = vmatprep.subr.mxu0 0.0
    %920 = vmatpush1.msra.mxu0 0.0
    %921 = vmatprep.subr.mxu0 0.0
    %922 = vmatpush1.msra.mxu0 0.0
    %923 = vmatprep.subr.mxu0 0.0
    %924 = vmatpush1.msra.mxu0 0.0
    %925 = vmatprep.subr.mxu0 0.0
    %926 = vmatpush1.msra.mxu0 0.0
    %927 = vmatprep.mubr.f32.mxu0 0.0
    %928 = vmatmul.mubr.f32.gmra.mrb[0].mxu0 %v861
    %v929 = vpop.f32.mrb[0].mxu0
    %v930 = vadd.f32 0.0, %v929
    %v931 = vpop.f32.mrb[0].mxu0
    %v932 = vadd.f32 0.0, %v931
    %933 = vdwg.mxu0
    %v934 = vadd.f32 %v859, %v930
    %v935 = vadd.f32 %v860, %v932
    %v936 = vxor.u32 %v934, 2147483648
    %v937 = vxor.u32 %v935, 2147483648
    %v938 = vmul.f32 %v936, 1.442695
    %v939 = vpow.pop %v938
    %v940 = vmul.f32 %v937, 1.442695
    %v941 = vpow.pop %v940
    %v942 = vadd.f32 %v939, 1.0
    %v943 = vadd.f32 %v941, 1.0
    %v944 = vrcp.pop %v942
    %v945 = vmul.f32 1.0, %v944
    %v946 = vrcp.pop %v943
    %v947 = vmul.f32 1.0, %v946
    %v948 = vmul.f32 %v945, %v65
    %v949 = vmul.f32 %v947, %v66
    %v950 = vadd.f32 %v948, %v67
    %v951 = vadd.f32 %v949, %v68
    %v952 = vmul.f32 %v950, %v755
    %v953 = vmul.f32 %v950, %v951
    %955 = vrot.lane.b32.xlu0 %v953, 64
    %v956 = vpop.permute.xlu0 %955
    %v958 = vadd.f32 %v952, %v956
    %v959 = vtanh.pop %v958
    %v960 = vmul.f32 %v951, %v959
    %962 = vrot.lane.b32.xlu0 %v960, 64
    %v963 = vpop.permute.xlu0 %962
    %v965 = vsel %vm147, %v963, %v858
    %966 = vmatprep.subr.mxu0 %v70
    %967 = vmatpush1.msra.mxu0 %v69
    %968 = vmatprep.subr.mxu0 %v72
    %969 = vmatpush1.msra.mxu0 %v71
    %970 = vmatprep.subr.mxu0 %v74
    %971 = vmatpush1.msra.mxu0 %v73
    %972 = vmatprep.subr.mxu0 %v76
    %973 = vmatpush1.msra.mxu0 %v75
    %974 = vmatprep.subr.mxu0 %v78
    %975 = vmatpush1.msra.mxu0 %v77
    %976 = vmatprep.subr.mxu0 %v80
    %977 = vmatpush1.msra.mxu0 %v79
    %978 = vmatprep.subr.mxu0 %v82
    %979 = vmatpush1.msra.mxu0 %v81
    %980 = vmatprep.subr.mxu0 %v84
    %981 = vmatpush1.msra.mxu0 %v83
    %982 = vmatprep.subr.mxu0 %v86
    %983 = vmatpush1.msra.mxu0 %v85
    %984 = vmatprep.subr.mxu0 %v88
    %985 = vmatpush1.msra.mxu0 %v87
    %986 = vmatprep.subr.mxu0 %v90
    %987 = vmatpush1.msra.mxu0 %v89
    %988 = vmatprep.subr.mxu0 %v92
    %989 = vmatpush1.msra.mxu0 %v91
    %990 = vmatprep.subr.mxu0 %v94
    %991 = vmatpush1.msra.mxu0 %v93
    %992 = vmatprep.subr.mxu0 %v96
    %993 = vmatpush1.msra.mxu0 %v95
    %994 = vmatprep.subr.mxu0 %v98
    %995 = vmatpush1.msra.mxu0 %v97
    %996 = vmatprep.subr.mxu0 %v100
    %997 = vmatpush1.msra.mxu0 %v99
    %998 = vmatprep.subr.mxu0 0.0
    %999 = vmatpush1.msra.mxu0 0.0
    %1000 = vmatprep.subr.mxu0 0.0
    %1001 = vmatpush1.msra.mxu0 0.0
    %1002 = vmatprep.subr.mxu0 0.0
    %1003 = vmatpush1.msra.mxu0 0.0
    %1004 = vmatprep.subr.mxu0 0.0
    %1005 = vmatpush1.msra.mxu0 0.0
    %1006 = vmatprep.subr.mxu0 0.0
    %1007 = vmatpush1.msra.mxu0 0.0
    %1008 = vmatprep.subr.mxu0 0.0
    %1009 = vmatpush1.msra.mxu0 0.0
    %1010 = vmatprep.subr.mxu0 0.0
    %1011 = vmatpush1.msra.mxu0 0.0
    %1012 = vmatprep.subr.mxu0 0.0
    %1013 = vmatpush1.msra.mxu0 0.0
    %1014 = vmatprep.subr.mxu0 0.0
    %1015 = vmatpush1.msra.mxu0 0.0
    %1016 = vmatprep.subr.mxu0 0.0
    %1017 = vmatpush1.msra.mxu0 0.0
    %1018 = vmatprep.subr.mxu0 0.0
    %1019 = vmatpush1.msra.mxu0 0.0
    %1020 = vmatprep.subr.mxu0 0.0
    %1021 = vmatpush1.msra.mxu0 0.0
    %1022 = vmatprep.subr.mxu0 0.0
    %1023 = vmatpush1.msra.mxu0 0.0
    %1024 = vmatprep.subr.mxu0 0.0
    %1025 = vmatpush1.msra.mxu0 0.0
    %1026 = vmatprep.subr.mxu0 0.0
    %1027 = vmatpush1.msra.mxu0 0.0
    %1028 = vmatprep.subr.mxu0 0.0
    %1029 = vmatpush1.msra.mxu0 0.0
    %1030 = vmatprep.mubr.f32.mxu0 0.0
    %1031 = vmatmul.mubr.f32.gmra.mrb[0].mxu0 %v965
    %v1032 = vpop.f32.mrb[0].mxu0
    %v1033 = vadd.f32 %v101, %v1032
    %v1034 = vpop.f32.mrb[0].mxu0
    %v1035 = vadd.f32 %v102, %v1034
    %1036 = vdwg.mxu0
    %v1037 = vxor.u32 %v1033, 2147483648
    %v1038 = vxor.u32 %v1035, 2147483648
    %v1039 = vmul.f32 %v1037, 1.442695
    %v1040 = vpow.pop %v1039
    %v1041 = vmul.f32 %v1038, 1.442695
    %v1042 = vpow.pop %v1041
    %v1043 = vadd.f32 %v1040, 1.0
    %v1044 = vadd.f32 %v1042, 1.0
    %v1045 = vrcp.pop %v1043
    %v1046 = vmul.f32 1.0, %v1045
    %v1047 = vrcp.pop %v1044
    %v1048 = vmul.f32 1.0, %v1047
    %v1049 = vmul.f32 %v1046, %v65
    %v1050 = vmul.f32 %v1048, %v66
    %v1051 = vadd.f32 %v1049, %v67
    %v1052 = vadd.f32 %v1050, %v68
    %v1053 = vmul.f32 %v1051, %v856
    %v1054 = vmul.f32 %v1051, %v1052
    %1056 = vrot.lane.b32.xlu0 %v1054, 64
    %v1057 = vpop.permute.xlu0 %1056
    %v1059 = vadd.f32 %v1053, %v1057
    %v1060 = vtanh.pop %v1059
    %v1061 = vmul.f32 %v1052, %v1060
    %v1062 = vld [vmem:[#allocation2 + $0x50] sm:$0xff]
    %v1063 = vld [vmem:[#allocation2 + $0x58] sm:$0xff]
    %v1064 = vsel %vm147, %v963, 0
    %1066 = vmatprep.subr.mxu0 %v104
    %1067 = vmatpush1.msra.mxu0 %v103
    %1068 = vmatprep.subr.mxu0 %v106
    %1069 = vmatpush1.msra.mxu0 %v105
    %1070 = vmatprep.subr.mxu0 %v108
    %1071 = vmatpush1.msra.mxu0 %v107
    %1072 = vmatprep.subr.mxu0 %v110
    %1073 = vmatpush1.msra.mxu0 %v109
    %1074 = vmatprep.subr.mxu0 %v112
    %1075 = vmatpush1.msra.mxu0 %v111
    %1076 = vmatprep.subr.mxu0 %v114
    %1077 = vmatpush1.msra.mxu0 %v113
    %1078 = vmatprep.subr.mxu0 %v116
    %1079 = vmatpush1.msra.mxu0 %v115
    %1080 = vmatprep.subr.mxu0 %v118
    %1081 = vmatpush1.msra.mxu0 %v117
    %1082 = vmatprep.subr.mxu0 0.0
    %1083 = vmatpush1.msra.mxu0 0.0
    %1084 = vmatprep.subr.mxu0 0.0
    %1085 = vmatpush1.msra.mxu0 0.0
    %1086 = vmatprep.subr.mxu0 0.0
    %1087 = vmatpush1.msra.mxu0 0.0
    %1088 = vmatprep.subr.mxu0 0.0
    %1089 = vmatpush1.msra.mxu0 0.0
    %1090 = vmatprep.subr.mxu0 0.0
    %1091 = vmatpush1.msra.mxu0 0.0
    %1092 = vmatprep.subr.mxu0 0.0
    %1093 = vmatpush1.msra.mxu0 0.0
    %1094 = vmatprep.subr.mxu0 0.0
    %1095 = vmatpush1.msra.mxu0 0.0
    %1096 = vmatprep.subr.mxu0 0.0
    %1097 = vmatpush1.msra.mxu0 0.0
    %1098 = vmatprep.subr.mxu0 0.0
    %1099 = vmatpush1.msra.mxu0 0.0
    %1100 = vmatprep.subr.mxu0 0.0
    %1101 = vmatpush1.msra.mxu0 0.0
    %1102 = vmatprep.subr.mxu0 0.0
    %1103 = vmatpush1.msra.mxu0 0.0
    %1104 = vmatprep.subr.mxu0 0.0
    %1105 = vmatpush1.msra.mxu0 0.0
    %1106 = vmatprep.subr.mxu0 0.0
    %1107 = vmatpush1.msra.mxu0 0.0
    %1108 = vmatprep.subr.mxu0 0.0
    %1109 = vmatpush1.msra.mxu0 0.0
    %1110 = vmatprep.subr.mxu0 0.0
    %1111 = vmatpush1.msra.mxu0 0.0
    %1112 = vmatprep.subr.mxu0 0.0
    %1113 = vmatpush1.msra.mxu0 0.0
    %1114 = vmatprep.subr.mxu0 0.0
    %1115 = vmatpush1.msra.mxu0 0.0
    %1116 = vmatprep.subr.mxu0 0.0
    %1117 = vmatpush1.msra.mxu0 0.0
    %1118 = vmatprep.subr.mxu0 0.0
    %1119 = vmatpush1.msra.mxu0 0.0
    %1120 = vmatprep.subr.mxu0 0.0
    %1121 = vmatpush1.msra.mxu0 0.0
    %1122 = vmatprep.subr.mxu0 0.0
    %1123 = vmatpush1.msra.mxu0 0.0
    %1124 = vmatprep.subr.mxu0 0.0
    %1125 = vmatpush1.msra.mxu0 0.0
    %1126 = vmatprep.subr.mxu0 0.0
    %1127 = vmatpush1.msra.mxu0 0.0
    %1128 = vmatprep.subr.mxu0 0.0
    %1129 = vmatpush1.msra.mxu0 0.0
    %1130 = vmatprep.mubr.f32.mxu0 0.0
    %1131 = vmatmul.mubr.f32.gmra.mrb[0].mxu0 %v1064
    %v1132 = vpop.f32.mrb[0].mxu0
    %v1133 = vadd.f32 0.0, %v1132
    %v1134 = vpop.f32.mrb[0].mxu0
    %v1135 = vadd.f32 0.0, %v1134
    %1136 = vdwg.mxu0
    %v1137 = vadd.f32 %v1062, %v1133
    %v1138 = vadd.f32 %v1063, %v1135
    %v1139 = vxor.u32 %v1137, 2147483648
    %v1140 = vxor.u32 %v1138, 2147483648
    %v1141 = vmul.f32 %v1139, 1.442695
    %v1142 = vpow.pop %v1141
    %v1143 = vmul.f32 %v1140, 1.442695
    %v1144 = vpow.pop %v1143
    %v1145 = vadd.f32 %v1142, 1.0
    %v1146 = vadd.f32 %v1144, 1.0
    %v1147 = vrcp.pop %v1145
    %v1148 = vmul.f32 1.0, %v1147
    %v1149 = vrcp.pop %v1146
    %v1150 = vmul.f32 1.0, %v1149
    %v1151 = vmul.f32 %v1148, %v65
    %v1152 = vmul.f32 %v1150, %v66
    %v1153 = vadd.f32 %v1151, %v67
    %v1154 = vadd.f32 %v1152, %v68
    %v1155 = vmul.f32 %v1153, %v958
    %v1156 = vmul.f32 %v1153, %v1154
    %1158 = vrot.lane.b32.xlu0 %v1156, 64
    %v1159 = vpop.permute.xlu0 %1158
    %v1161 = vadd.f32 %v1155, %v1159
    %v1162 = vtanh.pop %v1161
    %v1163 = vmul.f32 %v1154, %v1162
    %1165 = vrot.lane.b32.xlu0 %v1163, 64
    %v1166 = vpop.permute.xlu0 %1165
    %v1168 = vsel %vm147, %v1166, %v1061
    %1169 = vmatprep.subr.mxu0 %v70
    %1170 = vmatpush1.msra.mxu0 %v69
    %1171 = vmatprep.subr.mxu0 %v72
    %1172 = vmatpush1.msra.mxu0 %v71
    %1173 = vmatprep.subr.mxu0 %v74
    %1174 = vmatpush1.msra.mxu0 %v73
    %1175 = vmatprep.subr.mxu0 %v76
    %1176 = vmatpush1.msra.mxu0 %v75
    %1177 = vmatprep.subr.mxu0 %v78
    %1178 = vmatpush1.msra.mxu0 %v77
    %1179 = vmatprep.subr.mxu0 %v80
    %1180 = vmatpush1.msra.mxu0 %v79
    %1181 = vmatprep.subr.mxu0 %v82
    %1182 = vmatpush1.msra.mxu0 %v81
    %1183 = vmatprep.subr.mxu0 %v84
    %1184 = vmatpush1.msra.mxu0 %v83
    %1185 = vmatprep.subr.mxu0 %v86
    %1186 = vmatpush1.msra.mxu0 %v85
    %1187 = vmatprep.subr.mxu0 %v88
    %1188 = vmatpush1.msra.mxu0 %v87
    %1189 = vmatprep.subr.mxu0 %v90
    %1190 = vmatpush1.msra.mxu0 %v89
    %1191 = vmatprep.subr.mxu0 %v92
    %1192 = vmatpush1.msra.mxu0 %v91
    %1193 = vmatprep.subr.mxu0 %v94
    %1194 = vmatpush1.msra.mxu0 %v93
    %1195 = vmatprep.subr.mxu0 %v96
    %1196 = vmatpush1.msra.mxu0 %v95
    %1197 = vmatprep.subr.mxu0 %v98
    %1198 = vmatpush1.msra.mxu0 %v97
    %1199 = vmatprep.subr.mxu0 %v100
    %1200 = vmatpush1.msra.mxu0 %v99
    %1201 = vmatprep.subr.mxu0 0.0
    %1202 = vmatpush1.msra.mxu0 0.0
    %1203 = vmatprep.subr.mxu0 0.0
    %1204 = vmatpush1.msra.mxu0 0.0
    %1205 = vmatprep.subr.mxu0 0.0
    %1206 = vmatpush1.msra.mxu0 0.0
    %1207 = vmatprep.subr.mxu0 0.0
    %1208 = vmatpush1.msra.mxu0 0.0
    %1209 = vmatprep.subr.mxu0 0.0
    %1210 = vmatpush1.msra.mxu0 0.0
    %1211 = vmatprep.subr.mxu0 0.0
    %1212 = vmatpush1.msra.mxu0 0.0
    %1213 = vmatprep.subr.mxu0 0.0
    %1214 = vmatpush1.msra.mxu0 0.0
    %1215 = vmatprep.subr.mxu0 0.0
    %1216 = vmatpush1.msra.mxu0 0.0
    %1217 = vmatprep.subr.mxu0 0.0
    %1218 = vmatpush1.msra.mxu0 0.0
    %1219 = vmatprep.subr.mxu0 0.0
    %1220 = vmatpush1.msra.mxu0 0.0
    %1221 = vmatprep.subr.mxu0 0.0
    %1222 = vmatpush1.msra.mxu0 0.0
    %1223 = vmatprep.subr.mxu0 0.0
    %1224 = vmatpush1.msra.mxu0 0.0
    %1225 = vmatprep.subr.mxu0 0.0
    %1226 = vmatpush1.msra.mxu0 0.0
    %1227 = vmatprep.subr.mxu0 0.0
    %1228 = vmatpush1.msra.mxu0 0.0
    %1229 = vmatprep.subr.mxu0 0.0
    %1230 = vmatpush1.msra.mxu0 0.0
    %1231 = vmatprep.subr.mxu0 0.0
    %1232 = vmatpush1.msra.mxu0 0.0
    %1233 = vmatprep.mubr.f32.mxu0 0.0
    %1234 = vmatmul.mubr.f32.gmra.mrb[0].mxu0 %v1168
    %v1235 = vpop.f32.mrb[0].mxu0
    %v1236 = vadd.f32 %v101, %v1235
    %v1237 = vpop.f32.mrb[0].mxu0
    %v1238 = vadd.f32 %v102, %v1237
    %1239 = vdwg.mxu0
    %v1240 = vxor.u32 %v1236, 2147483648
    %v1241 = vxor.u32 %v1238, 2147483648
    %v1242 = vmul.f32 %v1240, 1.442695
    %v1243 = vpow.pop %v1242
    %v1244 = vmul.f32 %v1241, 1.442695
    %v1245 = vpow.pop %v1244
    %v1246 = vadd.f32 %v1243, 1.0
    %v1247 = vadd.f32 %v1245, 1.0
    %v1248 = vrcp.pop %v1246
    %v1249 = vmul.f32 1.0, %v1248
    %v1250 = vrcp.pop %v1247
    %v1251 = vmul.f32 1.0, %v1250
    %v1252 = vmul.f32 %v1249, %v65
    %v1253 = vmul.f32 %v1251, %v66
    %v1254 = vadd.f32 %v1252, %v67
    %v1255 = vadd.f32 %v1253, %v68
    %v1256 = vmul.f32 %v1254, %v1059
    %v1257 = vmul.f32 %v1254, %v1255
    %1259 = vrot.lane.b32.xlu0 %v1257, 64
    %v1260 = vpop.permute.xlu0 %1259
    %v1262 = vadd.f32 %v1256, %v1260
    %v1263 = vtanh.pop %v1262
    %v1264 = vmul.f32 %v1255, %v1263
    %v1265 = vld [vmem:[#allocation2 + $0x60] sm:$0xff]
    %v1266 = vld [vmem:[#allocation2 + $0x68] sm:$0xff]
    %v1267 = vsel %vm147, %v1166, 0
    %1269 = vmatprep.subr.mxu0 %v104
    %1270 = vmatpush1.msra.mxu0 %v103
    %1271 = vmatprep.subr.mxu0 %v106
    %1272 = vmatpush1.msra.mxu0 %v105
    %1273 = vmatprep.subr.mxu0 %v108
    %1274 = vmatpush1.msra.mxu0 %v107
    %1275 = vmatprep.subr.mxu0 %v110
    %1276 = vmatpush1.msra.mxu0 %v109
    %1277 = vmatprep.subr.mxu0 %v112
    %1278 = vmatpush1.msra.mxu0 %v111
    %1279 = vmatprep.subr.mxu0 %v114
    %1280 = vmatpush1.msra.mxu0 %v113
    %1281 = vmatprep.subr.mxu0 %v116
    %1282 = vmatpush1.msra.mxu0 %v115
    %1283 = vmatprep.subr.mxu0 %v118
    %1284 = vmatpush1.msra.mxu0 %v117
    %1285 = vmatprep.subr.mxu0 0.0
    %1286 = vmatpush1.msra.mxu0 0.0
    %1287 = vmatprep.subr.mxu0 0.0
    %1288 = vmatpush1.msra.mxu0 0.0
    %1289 = vmatprep.subr.mxu0 0.0
    %1290 = vmatpush1.msra.mxu0 0.0
    %1291 = vmatprep.subr.mxu0 0.0
    %1292 = vmatpush1.msra.mxu0 0.0
    %1293 = vmatprep.subr.mxu0 0.0
    %1294 = vmatpush1.msra.mxu0 0.0
    %1295 = vmatprep.subr.mxu0 0.0
    %1296 = vmatpush1.msra.mxu0 0.0
    %1297 = vmatprep.subr.mxu0 0.0
    %1298 = vmatpush1.msra.mxu0 0.0
    %1299 = vmatprep.subr.mxu0 0.0
    %1300 = vmatpush1.msra.mxu0 0.0
    %1301 = vmatprep.subr.mxu0 0.0
    %1302 = vmatpush1.msra.mxu0 0.0
    %1303 = vmatprep.subr.mxu0 0.0
    %1304 = vmatpush1.msra.mxu0 0.0
    %1305 = vmatprep.subr.mxu0 0.0
    %1306 = vmatpush1.msra.mxu0 0.0
    %1307 = vmatprep.subr.mxu0 0.0
    %1308 = vmatpush1.msra.mxu0 0.0
    %1309 = vmatprep.subr.mxu0 0.0
    %1310 = vmatpush1.msra.mxu0 0.0
    %1311 = vmatprep.subr.mxu0 0.0
    %1312 = vmatpush1.msra.mxu0 0.0
    %1313 = vmatprep.subr.mxu0 0.0
    %1314 = vmatpush1.msra.mxu0 0.0
    %1315 = vmatprep.subr.mxu0 0.0
    %1316 = vmatpush1.msra.mxu0 0.0
    %1317 = vmatprep.subr.mxu0 0.0
    %1318 = vmatpush1.msra.mxu0 0.0
    %1319 = vmatprep.subr.mxu0 0.0
    %1320 = vmatpush1.msra.mxu0 0.0
    %1321 = vmatprep.subr.mxu0 0.0
    %1322 = vmatpush1.msra.mxu0 0.0
    %1323 = vmatprep.subr.mxu0 0.0
    %1324 = vmatpush1.msra.mxu0 0.0
    %1325 = vmatprep.subr.mxu0 0.0
    %1326 = vmatpush1.msra.mxu0 0.0
    %1327 = vmatprep.subr.mxu0 0.0
    %1328 = vmatpush1.msra.mxu0 0.0
    %1329 = vmatprep.subr.mxu0 0.0
    %1330 = vmatpush1.msra.mxu0 0.0
    %1331 = vmatprep.subr.mxu0 0.0
    %1332 = vmatpush1.msra.mxu0 0.0
    %1333 = vmatprep.mubr.f32.mxu0 0.0
    %1334 = vmatmul.mubr.f32.gmra.mrb[0].mxu0 %v1267
    %v1335 = vpop.f32.mrb[0].mxu0
    %v1336 = vadd.f32 0.0, %v1335
    %v1337 = vpop.f32.mrb[0].mxu0
    %v1338 = vadd.f32 0.0, %v1337
    %1339 = vdwg.mxu0
    %v1340 = vadd.f32 %v1265, %v1336
    %v1341 = vadd.f32 %v1266, %v1338
    %v1342 = vxor.u32 %v1340, 2147483648
    %v1343 = vxor.u32 %v1341, 2147483648
    %v1344 = vmul.f32 %v1342, 1.442695
    %v1345 = vpow.pop %v1344
    %v1346 = vmul.f32 %v1343, 1.442695
    %v1347 = vpow.pop %v1346
    %v1348 = vadd.f32 %v1345, 1.0
    %v1349 = vadd.f32 %v1347, 1.0
    %v1350 = vrcp.pop %v1348
    %v1351 = vmul.f32 1.0, %v1350
    %v1352 = vrcp.pop %v1349
    %v1353 = vmul.f32 1.0, %v1352
    %v1354 = vmul.f32 %v1351, %v65
    %v1355 = vmul.f32 %v1353, %v66
    %v1356 = vadd.f32 %v1354, %v67
    %v1357 = vadd.f32 %v1355, %v68
    %v1358 = vmul.f32 %v1356, %v1161
    %v1359 = vmul.f32 %v1356, %v1357
    %1361 = vrot.lane.b32.xlu0 %v1359, 64
    %v1362 = vpop.permute.xlu0 %1361
    %v1364 = vadd.f32 %v1358, %v1362
    %v1365 = vtanh.pop %v1364
    %v1366 = vmul.f32 %v1357, %v1365
    %1368 = vrot.lane.b32.xlu0 %v1366, 64
    %v1369 = vpop.permute.xlu0 %1368
    %v1371 = vsel %vm147, %v1369, %v1264
    %1372 = vmatprep.subr.mxu0 %v70
    %1373 = vmatpush1.msra.mxu0 %v69
    %1374 = vmatprep.subr.mxu0 %v72
    %1375 = vmatpush1.msra.mxu0 %v71
    %1376 = vmatprep.subr.mxu0 %v74
    %1377 = vmatpush1.msra.mxu0 %v73
    %1378 = vmatprep.subr.mxu0 %v76
    %1379 = vmatpush1.msra.mxu0 %v75
    %1380 = vmatprep.subr.mxu0 %v78
    %1381 = vmatpush1.msra.mxu0 %v77
    %1382 = vmatprep.subr.mxu0 %v80
    %1383 = vmatpush1.msra.mxu0 %v79
    %1384 = vmatprep.subr.mxu0 %v82
    %1385 = vmatpush1.msra.mxu0 %v81
    %1386 = vmatprep.subr.mxu0 %v84
    %1387 = vmatpush1.msra.mxu0 %v83
    %1388 = vmatprep.subr.mxu0 %v86
    %1389 = vmatpush1.msra.mxu0 %v85
    %1390 = vmatprep.subr.mxu0 %v88
    %1391 = vmatpush1.msra.mxu0 %v87
    %1392 = vmatprep.subr.mxu0 %v90
    %1393 = vmatpush1.msra.mxu0 %v89
    %1394 = vmatprep.subr.mxu0 %v92
    %1395 = vmatpush1.msra.mxu0 %v91
    %1396 = vmatprep.subr.mxu0 %v94
    %1397 = vmatpush1.msra.mxu0 %v93
    %1398 = vmatprep.subr.mxu0 %v96
    %1399 = vmatpush1.msra.mxu0 %v95
    %1400 = vmatprep.subr.mxu0 %v98
    %1401 = vmatpush1.msra.mxu0 %v97
    %1402 = vmatprep.subr.mxu0 %v100
    %1403 = vmatpush1.msra.mxu0 %v99
    %1404 = vmatprep.subr.mxu0 0.0
    %1405 = vmatpush1.msra.mxu0 0.0
    %1406 = vmatprep.subr.mxu0 0.0
    %1407 = vmatpush1.msra.mxu0 0.0
    %1408 = vmatprep.subr.mxu0 0.0
    %1409 = vmatpush1.msra.mxu0 0.0
    %1410 = vmatprep.subr.mxu0 0.0
    %1411 = vmatpush1.msra.mxu0 0.0
    %1412 = vmatprep.subr.mxu0 0.0
    %1413 = vmatpush1.msra.mxu0 0.0
    %1414 = vmatprep.subr.mxu0 0.0
    %1415 = vmatpush1.msra.mxu0 0.0
    %1416 = vmatprep.subr.mxu0 0.0
    %1417 = vmatpush1.msra.mxu0 0.0
    %1418 = vmatprep.subr.mxu0 0.0
    %1419 = vmatpush1.msra.mxu0 0.0
    %1420 = vmatprep.subr.mxu0 0.0
    %1421 = vmatpush1.msra.mxu0 0.0
    %1422 = vmatprep.subr.mxu0 0.0
    %1423 = vmatpush1.msra.mxu0 0.0
    %1424 = vmatprep.subr.mxu0 0.0
    %1425 = vmatpush1.msra.mxu0 0.0
    %1426 = vmatprep.subr.mxu0 0.0
    %1427 = vmatpush1.msra.mxu0 0.0
    %1428 = vmatprep.subr.mxu0 0.0
    %1429 = vmatpush1.msra.mxu0 0.0
    %1430 = vmatprep.subr.mxu0 0.0
    %1431 = vmatpush1.msra.mxu0 0.0
    %1432 = vmatprep.subr.mxu0 0.0
    %1433 = vmatpush1.msra.mxu0 0.0
    %1434 = vmatprep.subr.mxu0 0.0
    %1435 = vmatpush1.msra.mxu0 0.0
    %1436 = vmatprep.mubr.f32.mxu0 0.0
    %1437 = vmatmul.mubr.f32.gmra.mrb[0].mxu0 %v1371
    %v1438 = vpop.f32.mrb[0].mxu0
    %v1439 = vadd.f32 %v101, %v1438
    %v1440 = vpop.f32.mrb[0].mxu0
    %v1441 = vadd.f32 %v102, %v1440
    %1442 = vdwg.mxu0
    %v1443 = vxor.u32 %v1439, 2147483648
    %v1444 = vxor.u32 %v1441, 2147483648
    %v1445 = vmul.f32 %v1443, 1.442695
    %v1446 = vpow.pop %v1445
    %v1447 = vmul.f32 %v1444, 1.442695
    %v1448 = vpow.pop %v1447
    %v1449 = vadd.f32 %v1446, 1.0
    %v1450 = vadd.f32 %v1448, 1.0
    %v1451 = vrcp.pop %v1449
    %v1452 = vmul.f32 1.0, %v1451
    %v1453 = vrcp.pop %v1450
    %v1454 = vmul.f32 1.0, %v1453
    %v1455 = vmul.f32 %v1452, %v65
    %v1456 = vmul.f32 %v1454, %v66
    %v1457 = vadd.f32 %v1455, %v67
    %v1458 = vadd.f32 %v1456, %v68
    %v1459 = vmul.f32 %v1457, %v1262
    %v1460 = vmul.f32 %v1457, %v1458
    %1462 = vrot.lane.b32.xlu0 %v1460, 64
    %v1463 = vpop.permute.xlu0 %1462
    %v1465 = vadd.f32 %v1459, %v1463
    %v1466 = vtanh.pop %v1465
    %v1467 = vmul.f32 %v1458, %v1466
    %v1468 = vld [vmem:[#allocation2 + $0x70] sm:$0xff]
    %v1469 = vld [vmem:[#allocation2 + $0x78] sm:$0xff]
    %v1470 = vsel %vm147, %v1369, 0
    %1472 = vmatprep.subr.mxu0 %v104
    %1473 = vmatpush1.msra.mxu0 %v103
    %1474 = vmatprep.subr.mxu0 %v106
    %1475 = vmatpush1.msra.mxu0 %v105
    %1476 = vmatprep.subr.mxu0 %v108
    %1477 = vmatpush1.msra.mxu0 %v107
    %1478 = vmatprep.subr.mxu0 %v110
    %1479 = vmatpush1.msra.mxu0 %v109
    %1480 = vmatprep.subr.mxu0 %v112
    %1481 = vmatpush1.msra.mxu0 %v111
    %1482 = vmatprep.subr.mxu0 %v114
    %1483 = vmatpush1.msra.mxu0 %v113
    %1484 = vmatprep.subr.mxu0 %v116
    %1485 = vmatpush1.msra.mxu0 %v115
    %1486 = vmatprep.subr.mxu0 %v118
    %1487 = vmatpush1.msra.mxu0 %v117
    %1488 = vmatprep.subr.mxu0 0.0
    %1489 = vmatpush1.msra.mxu0 0.0
    %1490 = vmatprep.subr.mxu0 0.0
    %1491 = vmatpush1.msra.mxu0 0.0
    %1492 = vmatprep.subr.mxu0 0.0
    %1493 = vmatpush1.msra.mxu0 0.0
    %1494 = vmatprep.subr.mxu0 0.0
    %1495 = vmatpush1.msra.mxu0 0.0
    %1496 = vmatprep.subr.mxu0 0.0
    %1497 = vmatpush1.msra.mxu0 0.0
    %1498 = vmatprep.subr.mxu0 0.0
    %1499 = vmatpush1.msra.mxu0 0.0
    %1500 = vmatprep.subr.mxu0 0.0
    %1501 = vmatpush1.msra.mxu0 0.0
    %1502 = vmatprep.subr.mxu0 0.0
    %1503 = vmatpush1.msra.mxu0 0.0
    %1504 = vmatprep.subr.mxu0 0.0
    %1505 = vmatpush1.msra.mxu0 0.0
    %1506 = vmatprep.subr.mxu0 0.0
    %1507 = vmatpush1.msra.mxu0 0.0
    %1508 = vmatprep.subr.mxu0 0.0
    %1509 = vmatpush1.msra.mxu0 0.0
    %1510 = vmatprep.subr.mxu0 0.0
    %1511 = vmatpush1.msra.mxu0 0.0
    %1512 = vmatprep.subr.mxu0 0.0
    %1513 = vmatpush1.msra.mxu0 0.0
    %1514 = vmatprep.subr.mxu0 0.0
    %1515 = vmatpush1.msra.mxu0 0.0
    %1516 = vmatprep.subr.mxu0 0.0
    %1517 = vmatpush1.msra.mxu0 0.0
    %1518 = vmatprep.subr.mxu0 0.0
    %1519 = vmatpush1.msra.mxu0 0.0
    %1520 = vmatprep.subr.mxu0 0.0
    %1521 = vmatpush1.msra.mxu0 0.0
    %1522 = vmatprep.subr.mxu0 0.0
    %1523 = vmatpush1.msra.mxu0 0.0
    %1524 = vmatprep.subr.mxu0 0.0
    %1525 = vmatpush1.msra.mxu0 0.0
    %1526 = vmatprep.subr.mxu0 0.0
    %1527 = vmatpush1.msra.mxu0 0.0
    %1528 = vmatprep.subr.mxu0 0.0
    %1529 = vmatpush1.msra.mxu0 0.0
    %1530 = vmatprep.subr.mxu0 0.0
    %1531 = vmatpush1.msra.mxu0 0.0
    %1532 = vmatprep.subr.mxu0 0.0
    %1533 = vmatpush1.msra.mxu0 0.0
    %1534 = vmatprep.subr.mxu0 0.0
    %1535 = vmatpush1.msra.mxu0 0.0
    %1536 = vmatprep.mubr.f32.mxu0 0.0
    %1537 = vmatmul.mubr.f32.gmra.mrb[0].mxu0 %v1470
    %v1538 = vpop.f32.mrb[0].mxu0
    %v1539 = vadd.f32 0.0, %v1538
    %v1540 = vpop.f32.mrb[0].mxu0
    %v1541 = vadd.f32 0.0, %v1540
    %1542 = vdwg.mxu0
    %v1543 = vadd.f32 %v1468, %v1539
    %v1544 = vadd.f32 %v1469, %v1541
    %v1545 = vxor.u32 %v1543, 2147483648
    %v1546 = vxor.u32 %v1544, 2147483648
    %v1547 = vmul.f32 %v1545, 1.442695
    %v1548 = vpow.pop %v1547
    %v1549 = vmul.f32 %v1546, 1.442695
    %v1550 = vpow.pop %v1549
    %v1551 = vadd.f32 %v1548, 1.0
    %v1552 = vadd.f32 %v1550, 1.0
    %v1553 = vrcp.pop %v1551
    %v1554 = vmul.f32 1.0, %v1553
    %v1555 = vrcp.pop %v1552
    %v1556 = vmul.f32 1.0, %v1555
    %v1557 = vmul.f32 %v1554, %v65
    %v1558 = vmul.f32 %v1556, %v66
    %v1559 = vadd.f32 %v1557, %v67
    %v1560 = vadd.f32 %v1558, %v68
    %v1561 = vmul.f32 %v1559, %v1364
    %v1562 = vmul.f32 %v1559, %v1560
    %1564 = vrot.lane.b32.xlu0 %v1562, 64
    %v1565 = vpop.permute.xlu0 %1564
    %v1567 = vadd.f32 %v1561, %v1565
    %v1568 = vtanh.pop %v1567
    %v1569 = vmul.f32 %v1560, %v1568
    %1571 = vrot.lane.b32.xlu0 %v1569, 64
    %v1572 = vpop.permute.xlu0 %1571
    %v1574 = vsel %vm147, %v1572, %v1467
    %1575 = vmatprep.subr.mxu0 %v70
    %1576 = vmatpush1.msra.mxu0 %v69
    %1577 = vmatprep.subr.mxu0 %v72
    %1578 = vmatpush1.msra.mxu0 %v71
    %1579 = vmatprep.subr.mxu0 %v74
    %1580 = vmatpush1.msra.mxu0 %v73
    %1581 = vmatprep.subr.mxu0 %v76
    %1582 = vmatpush1.msra.mxu0 %v75
    %1583 = vmatprep.subr.mxu0 %v78
    %1584 = vmatpush1.msra.mxu0 %v77
    %1585 = vmatprep.subr.mxu0 %v80
    %1586 = vmatpush1.msra.mxu0 %v79
    %1587 = vmatprep.subr.mxu0 %v82
    %1588 = vmatpush1.msra.mxu0 %v81
    %1589 = vmatprep.subr.mxu0 %v84
    %1590 = vmatpush1.msra.mxu0 %v83
    %1591 = vmatprep.subr.mxu0 %v86
    %1592 = vmatpush1.msra.mxu0 %v85
    %1593 = vmatprep.subr.mxu0 %v88
    %1594 = vmatpush1.msra.mxu0 %v87
    %1595 = vmatprep.subr.mxu0 %v90
    %1596 = vmatpush1.msra.mxu0 %v89
    %1597 = vmatprep.subr.mxu0 %v92
    %1598 = vmatpush1.msra.mxu0 %v91
    %1599 = vmatprep.subr.mxu0 %v94
    %1600 = vmatpush1.msra.mxu0 %v93
    %1601 = vmatprep.subr.mxu0 %v96
    %1602 = vmatpush1.msra.mxu0 %v95
    %1603 = vmatprep.subr.mxu0 %v98
    %1604 = vmatpush1.msra.mxu0 %v97
    %1605 = vmatprep.subr.mxu0 %v100
    %1606 = vmatpush1.msra.mxu0 %v99
    %1607 = vmatprep.subr.mxu0 0.0
    %1608 = vmatpush1.msra.mxu0 0.0
    %1609 = vmatprep.subr.mxu0 0.0
    %1610 = vmatpush1.msra.mxu0 0.0
    %1611 = vmatprep.subr.mxu0 0.0
    %1612 = vmatpush1.msra.mxu0 0.0
    %1613 = vmatprep.subr.mxu0 0.0
    %1614 = vmatpush1.msra.mxu0 0.0
    %1615 = vmatprep.subr.mxu0 0.0
    %1616 = vmatpush1.msra.mxu0 0.0
    %1617 = vmatprep.subr.mxu0 0.0
    %1618 = vmatpush1.msra.mxu0 0.0
    %1619 = vmatprep.subr.mxu0 0.0
    %1620 = vmatpush1.msra.mxu0 0.0
    %1621 = vmatprep.subr.mxu0 0.0
    %1622 = vmatpush1.msra.mxu0 0.0
    %1623 = vmatprep.subr.mxu0 0.0
    %1624 = vmatpush1.msra.mxu0 0.0
    %1625 = vmatprep.subr.mxu0 0.0
    %1626 = vmatpush1.msra.mxu0 0.0
    %1627 = vmatprep.subr.mxu0 0.0
    %1628 = vmatpush1.msra.mxu0 0.0
    %1629 = vmatprep.subr.mxu0 0.0
    %1630 = vmatpush1.msra.mxu0 0.0
    %1631 = vmatprep.subr.mxu0 0.0
    %1632 = vmatpush1.msra.mxu0 0.0
    %1633 = vmatprep.subr.mxu0 0.0
    %1634 = vmatpush1.msra.mxu0 0.0
    %1635 = vmatprep.subr.mxu0 0.0
    %1636 = vmatpush1.msra.mxu0 0.0
    %1637 = vmatprep.subr.mxu0 0.0
    %1638 = vmatpush1.msra.mxu0 0.0
    %1639 = vmatprep.mubr.f32.mxu0 0.0
    %1640 = vmatmul.mubr.f32.gmra.mrb[0].mxu0 %v1574
    %v1641 = vpop.f32.mrb[0].mxu0
    %v1642 = vadd.f32 %v101, %v1641
    %v1643 = vpop.f32.mrb[0].mxu0
    %v1644 = vadd.f32 %v102, %v1643
    %1645 = vdwg.mxu0
    %v1646 = vxor.u32 %v1642, 2147483648
    %v1647 = vxor.u32 %v1644, 2147483648
    %v1648 = vmul.f32 %v1646, 1.442695
    %v1649 = vpow.pop %v1648
    %v1650 = vmul.f32 %v1647, 1.442695
    %v1651 = vpow.pop %v1650
    %v1652 = vadd.f32 %v1649, 1.0
    %v1653 = vadd.f32 %v1651, 1.0
    %v1654 = vrcp.pop %v1652
    %v1655 = vmul.f32 1.0, %v1654
    %v1656 = vrcp.pop %v1653
    %v1657 = vmul.f32 1.0, %v1656
    %v1658 = vmul.f32 %v1655, %v65
    %v1659 = vmul.f32 %v1657, %v66
    %v1660 = vadd.f32 %v1658, %v67
    %v1661 = vadd.f32 %v1659, %v68
    %v1662 = vmul.f32 %v1660, %v1465
    %v1663 = vmul.f32 %v1660, %v1661
    %1665 = vrot.lane.b32.xlu0 %v1663, 64
    %v1666 = vpop.permute.xlu0 %1665
    %v1668 = vadd.f32 %v1662, %v1666
    %v1669 = vtanh.pop %v1668
    %v1670 = vmul.f32 %v1661, %v1669
    %vm1671 = vcmp.ge.s32.totalorder %v57, 64
    %vm1672 = vcmp.lt.s32.totalorder %v57, 96
    %vm1673 = vmand %vm1671, %vm1672
    %v1674 = vsel %vm1673, 2.0, 1.0
    %v1675 = vsel %vm1673, -1.0, 0.0
    %v1676 = vld [vmem:[#allocation5 + $0x8] sm:$0xff]
    %v1677 = vld [vmem:[#allocation5 + $0x10] sm:$0xff]
    %v1678 = vld [vmem:[#allocation5 + $0x18] sm:$0xff]
    %v1679 = vld [vmem:[#allocation5 + $0x20] sm:$0xff]
    %v1680 = vld [vmem:[#allocation5 + $0x48] sm:$0xff]
    %v1681 = vld [vmem:[#allocation5] sm:$0xff]
    %v1682 = vxor.u32 %v1681, 2147483648
    %v1683 = vmul.f32 %v1682, 1.442695
    %v1684 = vpow.pop %v1683
    %v1685 = vadd.f32 %v1684, 1.0
    %v1686 = vrcp.pop %v1685
    %v1687 = vmul.f32 1.0, %v1686
    %v1688 = vmul.f32 %v1687, %v1674
    %v1689 = vadd.f32 %v1688, %v1675
    %1691 = vrot.lane.b32.xlu0 %v1689, 64
    %v1692 = vpop.permute.xlu0 %1691
    %v1694 = vmul.f32 %v1689, %v1692
    %v1695 = vtanh.pop %v1694
    %1697 = vrot.lane.b32.xlu0 %v1695, 96
    %v1698 = vpop.permute.xlu0 %1697
    %v1700 = vmul.f32 %v1689, %v1698
    %1702 = vrot.lane.b32.xlu0 %v1700, 32
    %v1703 = vpop.permute.xlu0 %1702
    %vm1704 = vcmask 261120
    %v1705 = vsel %vm1704, %v1703, 0
    %1707 = vmatprep.subr.mxu0 0.0
    %1708 = vmatpush1.msra.mxu0 %v1676
    %1709 = vmatprep.subr.mxu0 0.0
    %1710 = vmatpush1.msra.mxu0 %v1677
    %1711 = vmatprep.subr.mxu0 0.0
    %1712 = vmatpush1.msra.mxu0 %v1678
    %1713 = vmatprep.subr.mxu0 0.0
    %1714 = vmatpush1.msra.mxu0 %v1679
    %1715 = vmatprep.subr.mxu0 0.0
    %1716 = vmatpush1.msra.mxu0 0.0
    %1717 = vmatprep.subr.mxu0 0.0
    %1718 = vmatpush1.msra.mxu0 0.0
    %1719 = vmatprep.subr.mxu0 0.0
    %1720 = vmatpush1.msra.mxu0 0.0
    %1721 = vmatprep.subr.mxu0 0.0
    %1722 = vmatpush1.msra.mxu0 0.0
    %1723 = vmatprep.subr.mxu0 0.0
    %1724 = vmatpush1.msra.mxu0 0.0
    %1725 = vmatprep.subr.mxu0 0.0
    %1726 = vmatpush1.msra.mxu0 0.0
    %1727 = vmatprep.subr.mxu0 0.0
    %1728 = vmatpush1.msra.mxu0 0.0
    %1729 = vmatprep.subr.mxu0 0.0
    %1730 = vmatpush1.msra.mxu0 0.0
    %1731 = vmatprep.subr.mxu0 0.0
    %1732 = vmatpush1.msra.mxu0 0.0
    %1733 = vmatprep.subr.mxu0 0.0
    %1734 = vmatpush1.msra.mxu0 0.0
    %1735 = vmatprep.subr.mxu0 0.0
    %1736 = vmatpush1.msra.mxu0 0.0
    %1737 = vmatprep.subr.mxu0 0.0
    %1738 = vmatpush1.msra.mxu0 0.0
    %1739 = vmatprep.subr.mxu0 0.0
    %1740 = vmatpush1.msra.mxu0 0.0
    %1741 = vmatprep.subr.mxu0 0.0
    %1742 = vmatpush1.msra.mxu0 0.0
    %1743 = vmatprep.subr.mxu0 0.0
    %1744 = vmatpush1.msra.mxu0 0.0
    %1745 = vmatprep.subr.mxu0 0.0
    %1746 = vmatpush1.msra.mxu0 0.0
    %1747 = vmatprep.subr.mxu0 0.0
    %1748 = vmatpush1.msra.mxu0 0.0
    %1749 = vmatprep.subr.mxu0 0.0
    %1750 = vmatpush1.msra.mxu0 0.0
    %1751 = vmatprep.subr.mxu0 0.0
    %1752 = vmatpush1.msra.mxu0 0.0
    %1753 = vmatprep.subr.mxu0 0.0
    %1754 = vmatpush1.msra.mxu0 0.0
    %1755 = vmatprep.subr.mxu0 0.0
    %1756 = vmatpush1.msra.mxu0 0.0
    %1757 = vmatprep.subr.mxu0 0.0
    %1758 = vmatpush1.msra.mxu0 0.0
    %1759 = vmatprep.subr.mxu0 0.0
    %1760 = vmatpush1.msra.mxu0 0.0
    %1761 = vmatprep.subr.mxu0 0.0
    %1762 = vmatpush1.msra.mxu0 0.0
    %1763 = vmatprep.subr.mxu0 0.0
    %1764 = vmatpush1.msra.mxu0 0.0
    %1765 = vmatprep.subr.mxu0 0.0
    %1766 = vmatpush1.msra.mxu0 0.0
    %1767 = vmatprep.subr.mxu0 0.0
    %1768 = vmatpush1.msra.mxu0 0.0
    %1769 = vmatprep.subr.mxu0 0.0
    %1770 = vmatpush1.msra.mxu0 0.0
    %1771 = vmatprep.mubr.f32.mxu0 0.0
    %1772 = vmatmul.mubr.f32.gmra.mrb[0].mxu0 %v1705
    %v1773 = vpop.f32.mrb[0].mxu0
    %v1774 = vadd.f32 %v1680, %v1773
    %v1775 = vpop.f32.mrb[0].mxu0
    %1776 = vdwg.mxu0
    %v1777 = vxor.u32 %v1774, 2147483648
    %v1778 = vmul.f32 %v1777, 1.442695
    %v1779 = vpow.pop %v1778
    %v1780 = vadd.f32 %v1779, 1.0
    %v1781 = vrcp.pop %v1780
    %v1782 = vmul.f32 1.0, %v1781
    %v1783 = vmul.f32 %v1782, %v1674
    %v1784 = vadd.f32 %v1783, %v1675
    %1786 = vrot.lane.b32.xlu0 %v1784, 64
    %v1787 = vpop.permute.xlu0 %1786
    %v1789 = vmul.f32 %v1784, %v1787
    %v1790 = vtanh.pop %v1789
    %1792 = vrot.lane.b32.xlu0 %v1790, 96
    %v1793 = vpop.permute.xlu0 %1792
    %v1795 = vmul.f32 %v1784, %v1793
    %1797 = vrot.lane.b32.xlu0 %v1670, 64
    %v1798 = vpop.permute.xlu0 %1797
    %1801 = vrot.lane.b32.xlu0 %v1795, 96
    %v1802 = vpop.permute.xlu0 %1801
    %v1804 = vsel %vm147, %v1798, %v1802
    %v1805 = vld [vmem:[#allocation7] sm:$0xff]
    %v1806 = vld [vmem:[#allocation7 + $0x8] sm:$0xff]
    %v1807 = vld [vmem:[#allocation7 + $0x10] sm:$0xff]
    %v1808 = vld [vmem:[#allocation7 + $0x18] sm:$0xff]
    %v1809 = vld [vmem:[#allocation7 + $0x20] sm:$0xff]
    %v1810 = vld [vmem:[#allocation7 + $0x28] sm:$0xff]
    %v1811 = vld [vmem:[#allocation7 + $0x30] sm:$0xff]
    %v1812 = vld [vmem:[#allocation7 + $0x38] sm:$0xff]
    %v1813 = vld [vmem:[#allocation7 + $0x40] sm:$0xff]
    %v1814 = vld [vmem:[#allocation7 + $0x48] sm:$0xff]
    %v1815 = vld [vmem:[#allocation7 + $0x50] sm:$0xff]
    %v1816 = vld [vmem:[#allocation7 + $0x58] sm:$0xff]
    %v1817 = vld [vmem:[#allocation7 + $0x60] sm:$0x1]
    %v1818 = vlaneseq
    %v1819 = vshrl.u32 %v1818, 7
    %v1820 = vsub.s32 0, %v1819
    %v1821 = vrot.slane %v1817, %v1820
    %vm1822 = vcmask 785408
    %v1824 = vsel %vm1822, %v1804, 0
    %1826 = vmatprep.subr.mxu0 0.0
    %1827 = vmatpush1.msra.mxu0 %v1805
    %1828 = vmatprep.subr.mxu0 0.0
    %1829 = vmatpush1.msra.mxu0 %v1806
    %1830 = vmatprep.subr.mxu0 0.0
    %1831 = vmatpush1.msra.mxu0 %v1807
    %1832 = vmatprep.subr.mxu0 0.0
    %1833 = vmatpush1.msra.mxu0 %v1808
    %1834 = vmatprep.subr.mxu0 0.0
    %1835 = vmatpush1.msra.mxu0 %v1809
    %1836 = vmatprep.subr.mxu0 0.0
    %1837 = vmatpush1.msra.mxu0 %v1810
    %1838 = vmatprep.subr.mxu0 0.0
    %1839 = vmatpush1.msra.mxu0 %v1811
    %1840 = vmatprep.subr.mxu0 0.0
    %1841 = vmatpush1.msra.mxu0 %v1812
    %1842 = vmatprep.subr.mxu0 0.0
    %1843 = vmatpush1.msra.mxu0 %v1813
    %1844 = vmatprep.subr.mxu0 0.0
    %1845 = vmatpush1.msra.mxu0 %v1814
    %1846 = vmatprep.subr.mxu0 0.0
    %1847 = vmatpush1.msra.mxu0 %v1815
    %1848 = vmatprep.subr.mxu0 0.0
    %1849 = vmatpush1.msra.mxu0 %v1816
    %1850 = vmatprep.subr.mxu0 0.0
    %1851 = vmatpush1.msra.mxu0 0.0
    %1852 = vmatprep.subr.mxu0 0.0
    %1853 = vmatpush1.msra.mxu0 0.0
    %1854 = vmatprep.subr.mxu0 0.0
    %1855 = vmatpush1.msra.mxu0 0.0
    %1856 = vmatprep.subr.mxu0 0.0
    %1857 = vmatpush1.msra.mxu0 0.0
    %1858 = vmatprep.subr.mxu0 0.0
    %1859 = vmatpush1.msra.mxu0 0.0
    %1860 = vmatprep.subr.mxu0 0.0
    %1861 = vmatpush1.msra.mxu0 0.0
    %1862 = vmatprep.subr.mxu0 0.0
    %1863 = vmatpush1.msra.mxu0 0.0
    %1864 = vmatprep.subr.mxu0 0.0
    %1865 = vmatpush1.msra.mxu0 0.0
    %1866 = vmatprep.subr.mxu0 0.0
    %1867 = vmatpush1.msra.mxu0 0.0
    %1868 = vmatprep.subr.mxu0 0.0
    %1869 = vmatpush1.msra.mxu0 0.0
    %1870 = vmatprep.subr.mxu0 0.0
    %1871 = vmatpush1.msra.mxu0 0.0
    %1872 = vmatprep.subr.mxu0 0.0
    %1873 = vmatpush1.msra.mxu0 0.0
    %1874 = vmatprep.subr.mxu0 0.0
    %1875 = vmatpush1.msra.mxu0 0.0
    %1876 = vmatprep.subr.mxu0 0.0
    %1877 = vmatpush1.msra.mxu0 0.0
    %1878 = vmatprep.subr.mxu0 0.0
    %1879 = vmatpush1.msra.mxu0 0.0
    %1880 = vmatprep.subr.mxu0 0.0
    %1881 = vmatpush1.msra.mxu0 0.0
    %1882 = vmatprep.subr.mxu0 0.0
    %1883 = vmatpush1.msra.mxu0 0.0
    %1884 = vmatprep.subr.mxu0 0.0
    %1885 = vmatpush1.msra.mxu0 0.0
    %1886 = vmatprep.subr.mxu0 0.0
    %1887 = vmatpush1.msra.mxu0 0.0
    %1888 = vmatprep.subr.mxu0 0.0
    %1889 = vmatpush1.msra.mxu0 0.0
    %1890 = vmatprep.mubr.f32.mxu0 0.0
    %1891 = vmatmul.mubr.f32.gmra.mrb[0].mxu0 %v1824
    %v1892 = vpop.f32.mrb[0].mxu0
    %v1893 = vadd.f32 %v1821, %v1892
    %v1894 = vpop.f32.mrb[0].mxu0
    %1895 = vdwg.mxu0
    %1896 = vst [vmem:[#allocation8] sm:$0xff] %v1893
    // Predicated region
    $region26: #{tpu_custom_call.1} parent=1 // pred_check
      _
    $region27: #{tpu_custom_call.1} parent=1 // pred_check_branch
      %1898 = sbr.rel (0) target = $region29
    $region28: #{tpu_custom_call.1} parent=1 // pred_region
      %s1900 = ssub.s32 128, 128
      %1901 = vsyncadd [#allocation4], %s1900
      %s1903 = sshll.u32 [#allocation8], 4
      %s1904 = int_to_ptr.vmem [resolvable:$true] %s1903
      %1906 = dma.vmem_to_hbm [thread:$0]  %s1904, 128, %s3, [#allocation4]
    $region29: #{tpu_custom_call.1} parent=1 // pred_fallthru
      _
    // Predicated region
    $region30: #{tpu_custom_call.1} parent=1 // pred_check
      _
    $region31: #{tpu_custom_call.1} parent=1 // pred_check_branch
      %1908 = sbr.rel (0) target = $region33
    $region32: #{tpu_custom_call.1} parent=1 // pred_region
      %1909 = dma.done [#allocation4], 128
    $region33: #{tpu_custom_call.1} parent=1 // pred_fallthru
      _
    %1910 = vsyncpa [#allocation3], 1
    %1911 = vsyncpa [#allocation6], 1
    %1912 = vsyncpa [#allocation4], 1

</llo_original>
